<compile_context>
chip_gen: v5e
topology: v5e:2x2
jax: 0.10.0
libtpu: 0.0.40
codegen_flags: <defaults>
</compile_context>

<pallas_src>
import math

import jax
import jax.numpy as jnp
import numpy as np
from jax.experimental import pallas as pl
from jax.experimental.pallas import tpu as pltpu

GP = 128          # per-gate lane block (lane-aligned gates) and padded output width


# ----------------------------- Fused kernel -----------------------------------
def _gru_net_kernel(x_ref, wi_ref, bi_ref, wh_ref, bhn_ref, h0_ref,
                    w1_ref, b1_ref, w2_ref, b2_ref,
                    out_ref, hfin_ref,
                    gx_scr, go_scr):
    # gx_scr: (T, Bb, 3*GP) input-gate pre-activations (all timesteps, precomputed)
    # go_scr: (T, Bb, GP)   GRU hidden outputs per timestep (lane-padded to 128)
    T, Bb, GP3 = gx_scr.shape
    gp = go_scr.shape[2]
    gp2 = 2 * gp
    D = x_ref.shape[-1]

    # ---- batched input projection for ALL timesteps (off the serial path) ----
    # bi already contains the r/z parts of b_hh (folded at fuse time).
    x = x_ref[...].reshape(T * Bb, D)                       # zero-cost reshape (Bb%8==0)
    gx = jnp.dot(x, wi_ref[...], preferred_element_type=jnp.float32) + bi_ref[...]
    gx_scr[...] = gx.reshape(T, Bb, GP3)

    # ---- hoist recurrent weights / bias (and broadcast) out of the loop ----
    wh = wh_ref[...]                                        # (GP, 3*GP)
    bhn = jnp.broadcast_to(bhn_ref[...], (Bb, gp))          # (Bb, GP), one broadcast

    # ---- serial recurrence: only h @ W_h_all (+ gate math) per step ----
    def step(t, h):
        g_x = gx_scr[t]                                     # (Bb, 3*GP) dense load
        g_h = jnp.dot(h, wh, preferred_element_type=jnp.float32)     # (Bb, 3*GP)
        rz = jax.nn.sigmoid(g_x[:, :gp2] + g_h[:, :gp2])    # one wide EUP issue (r|z)
        r = rz[:, :gp]                                      # 128-aligned slices
        z = rz[:, gp:gp2]
        n = jnp.tanh(g_x[:, gp2:] + r * (g_h[:, gp2:] + bhn))
        h_new = n + z * (h - n)                             # == (1-z)*n + z*h
        go_scr[t] = h_new                                   # dense (8,128)-tiled store
        return h_new

    h_fin = jax.lax.fori_loop(0, T, step, h0_ref[...], unroll=min(T, 8))
    hfin_ref[...] = h_fin                                   # written once, lane-dense

    # ---- fused policy/value heads, batched over all T*Bb rows ----
    g = go_scr[...].reshape(T * Bb, gp)
    h1 = jnp.maximum(
        jnp.dot(g, w1_ref[...], preferred_element_type=jnp.float32) + b1_ref[...],
        0.0)                                                # (T*Bb, 2H)
    # w2 is block-diagonal [w2p; w2v] padded to 128 lanes -> lane-dense store.
    out = jnp.dot(h1, w2_ref[...], preferred_element_type=jnp.float32) + b2_ref[...]
    out_ref[...] = out.reshape(T, Bb, gp)                   # (T, Bb, 128)


# ----------------------------- Parameter init ----------------------------------
def init_params(key, in_size, out_size, hidden):
    """PyTorch-style uniform(-1/sqrt(fan), 1/sqrt(fan)) init; raw (unfused) layout."""
    keys = jax.random.split(key, 12)

    def u(k, shape, fan):
        bound = 1.0 / math.sqrt(fan)
        return jax.random.uniform(k, shape, jnp.float32, -bound, bound)

    H, D = hidden, in_size
    return {
        # GRU (PyTorch layout: gates stacked r,z,n)
        "w_ih": u(keys[0], (3 * H, D), H),
        "w_hh": u(keys[1], (3 * H, H), H),
        "b_ih": u(keys[2], (3 * H,), H),
        "b_hh": u(keys[3], (3 * H,), H),
        # policy head: Linear(H,H) -> ReLU -> Linear(H,out)   (stored as (in,out))
        "w1p": u(keys[4], (H, H), H), "b1p": u(keys[5], (1, H), H),
        "w2p": u(keys[6], (H, out_size), H), "b2p": u(keys[7], (1, out_size), H),
        # value head: Linear(H,H) -> ReLU -> Linear(H,1)
        "w1v": u(keys[8], (H, H), H), "b1v": u(keys[9], (1, H), H),
        "w2v": u(keys[10], (H, 1), H), "b2v": u(keys[11], (1, 1), H),
    }


# ----------------------------- Parameter fusion ---------------------------------
def fuse_params(p, out_size):
    """Build the lane-aligned / fused weight layout the kernel consumes."""
    H = p["w_hh"].shape[1]
    D = p["w_ih"].shape[1]
    assert out_size + 1 <= GP

    wi = jnp.zeros((D, 3 * GP), jnp.float32)
    wh = jnp.zeros((GP, 3 * GP), jnp.float32)
    bi = jnp.zeros((1, 3 * GP), jnp.float32)
    for g in range(3):                                  # gate order: r, z, n
        wi = wi.at[:, g * GP:g * GP + H].set(p["w_ih"][g * H:(g + 1) * H, :].T)
        wh = wh.at[:H, g * GP:g * GP + H].set(p["w_hh"][g * H:(g + 1) * H, :].T)
        bg = p["b_ih"][g * H:(g + 1) * H]
        if g < 2:                                       # fold b_hr / b_hz into bi
            bg = bg + p["b_hh"][g * H:(g + 1) * H]
        bi = bi.at[0, g * GP:g * GP + H].set(bg)
    bhn = jnp.zeros((1, GP), jnp.float32).at[0, :H].set(p["b_hh"][2 * H:3 * H])

    # Head layer 1: policy & value first layers concatenated, rows lane-padded to 128.
    w1 = jnp.zeros((GP, 2 * H), jnp.float32)
    w1 = w1.at[:H, :H].set(p["w1p"]).at[:H, H:].set(p["w1v"])
    b1 = jnp.concatenate([p["b1p"], p["b1v"]], axis=1)          # (1, 2H)

    # Head layer 2: block-diagonal, padded to a lane-dense 128-wide slab.
    #   cols [0, out)  <- policy logits (from h1[:, :H] @ w2p)
    #   col  [out]     <- value         (from h1[:, H:] @ w2v)
    w2 = jnp.zeros((2 * H, GP), jnp.float32)
    w2 = w2.at[:H, :out_size].set(p["w2p"])
    w2 = w2.at[H:, out_size:out_size + 1].set(p["w2v"])
    b2 = jnp.zeros((1, GP), jnp.float32)
    b2 = b2.at[0, :out_size].set(p["b2p"][0])
    b2 = b2.at[0, out_size:out_size + 1].set(p["b2v"][0])

    return {"wi": wi, "bi": bi, "wh": wh, "bhn": bhn,
            "w1": w1, "b1": b1, "w2": w2, "b2": b2}


# ----------------------------- Full forward -----------------------------------
def gru_net_forward(fused, state, gru_hx, out_size):
    """state: (B, T, in_size) batch_first, gru_hx: (1, B, hidden).
    Returns policy_logits (B, T, out), value (B, T, 1), gru_hx (1, B, hidden)."""
    B, T, D = state.shape
    H = gru_hx.shape[-1]

    # Pad batch to a multiple of 8 (sublane-dense per-step stores); pick a batch
    # block so v7x can split the grid across its two TensorCores when B is large.
    B_pad = ((B + 7) // 8) * 8
    B_blk = min(B_pad, 128)
    B_pad = ((B_pad + B_blk - 1) // B_blk) * B_blk
    nb = B_pad // B_blk

    x = jnp.zeros((B_pad, T, D), jnp.float32).at[:B].set(state)
    x_tb = jnp.transpose(x, (1, 0, 2))                        # (T, B_pad, D), tiny
    h0 = jnp.zeros((B_pad, GP), jnp.float32).at[:B, :H].set(gru_hx[0])

    # --- explicit VMEM budget + cost estimate ---
    def f32b(shape):
        return int(np.prod(shape)) * 4

    weight_bytes = sum(f32b(fused[k].shape)
                       for k in ("wi", "bi", "wh", "bhn", "w1", "b1", "w2", "b2"))
    block_bytes = (f32b((T, B_blk, D)) + f32b((B_blk, GP))
                   + f32b((T, B_blk, GP)) + f32b((B_blk, GP)))
    scratch_bytes = f32b((T, B_blk, 3 * GP)) + f32b((T, B_blk, GP))
    vmem_limit = int(min(64 * 1024 * 1024,
                         max(16 * 1024 * 1024,
                             2 * (weight_bytes + block_bytes) + scratch_bytes + (4 << 20))))

    flops = (2 * T * B_pad * D * 3 * GP          # input projection
             + 2 * T * B_pad * GP * 3 * GP       # recurrent matmuls
             + 2 * T * B_pad * GP * 2 * H        # head layer 1
             + 2 * T * B_pad * 2 * H * GP)       # head layer 2
    transcendentals = T * B_pad * 3 * GP
    bytes_accessed = (f32b((T, B_pad, D)) + f32b((B_pad, GP))
                      + f32b((T, B_pad, GP)) + f32b((B_pad, GP)) + weight_bytes)

    out, hfin = pl.pallas_call(
        _gru_net_kernel,
        out_shape=(jax.ShapeDtypeStruct((T, B_pad, GP), jnp.float32),
                   jax.ShapeDtypeStruct((B_pad, GP), jnp.float32)),
        grid_spec=pltpu.PrefetchScalarGridSpec(
            num_scalar_prefetch=0,
            grid=(nb,),
            in_specs=[
                pl.BlockSpec((T, B_blk, D), lambda b: (0, b, 0)),      # x (time-major)
                pl.BlockSpec((D, 3 * GP), lambda b: (0, 0)),           # wi
                pl.BlockSpec((1, 3 * GP), lambda b: (0, 0)),           # bi (b_hh r/z folded)
                pl.BlockSpec((GP, 3 * GP), lambda b: (0, 0)),          # wh
                pl.BlockSpec((1, GP), lambda b: (0, 0)),               # b_hn
                pl.BlockSpec((B_blk, GP), lambda b: (b, 0)),           # h0 (lane-padded)
                pl.BlockSpec((GP, 2 * H), lambda b: (0, 0)),           # w1
                pl.BlockSpec((1, 2 * H), lambda b: (0, 0)),            # b1
                pl.BlockSpec((2 * H, GP), lambda b: (0, 0)),           # w2 (block-diag)
                pl.BlockSpec((1, GP), lambda b: (0, 0)),               # b2
            ],
            out_specs=(
                pl.BlockSpec((T, B_blk, GP), lambda b: (0, b, 0)),     # fused logits|value
                pl.BlockSpec((B_blk, GP), lambda b: (b, 0)),           # final hidden
            ),
            scratch_shapes=[pltpu.VMEM((T, B_blk, 3 * GP), jnp.float32),
                            pltpu.VMEM((T, B_blk, GP), jnp.float32)],
        ),
        compiler_params=pltpu.CompilerParams(
            dimension_semantics=("parallel",),          # batch blocks are independent
            vmem_limit_bytes=vmem_limit),
        cost_estimate=pl.CostEstimate(flops=flops,
                                      transcendentals=transcendentals,
                                      bytes_accessed=bytes_accessed),
    )(x_tb, fused["wi"], fused["bi"], fused["wh"], fused["bhn"], h0,
      fused["w1"], fused["b1"], fused["w2"], fused["b2"])

    # Slice FIRST (out_size+1 << 128 lanes), then transpose the tiny results.
    pol = jnp.transpose(out[:, :B, :out_size], (1, 0, 2))               # (B, T, out)
    val = jnp.transpose(out[:, :B, out_size:out_size + 1], (1, 0, 2))   # (B, T, 1)
    return pol, val, hfin[:B, :H][None]                                 # (1, B, H)


# ----------------------------- Pure-JAX reference ------------------------------
def gru_net_reference(params, state, gru_hx):
    p = params
    H = gru_hx.shape[-1]
    w_ih, w_hh, b_ih, b_hh = p["w_ih"], p["w_hh"], p["b_ih"], p["b_hh"]

    def step(h, x_t):
        gi = x_t @ w_ih.T + b_ih
        gh = h @ w_hh.T + b_hh
        r = jax.nn.sigmoid(gi[:, :H] + gh[:, :H])
        z = jax.nn.sigmoid(gi[:, H:2 * H] + gh[:, H:2 * H])
        n = jnp.tanh(gi[:, 2 * H:] + r * gh[:, 2 * H:])
        h_new = (1.0 - z) * n + z * h
        return h_new, h_new

    h_fin, ys = jax.lax.scan(step, gru_hx[0], jnp.transpose(state, (1, 0, 2)))
    gru_out = jnp.transpose(ys, (1, 0, 2))
    hp = jnp.maximum(gru_out @ p["w1p"] + p["b1p"], 0.0)
    pol = hp @ p["w2p"] + p["b2p"]
    hv = jnp.maximum(gru_out @ p["w1v"] + p["b1v"], 0.0)
    val = hv @ p["w2v"] + p["b2v"]
    return pol, val, h_fin[None]


# ----------------------------- Main --------------------------------------------
if __name__ == "__main__":
    in_size, out_size, hidden = 8, 4, 32
    B, T = 2, 8

    key = jax.random.PRNGKey(0)
    k_params, k_state, k_hx = jax.random.split(key, 3)

    params = init_params(k_params, in_size, out_size, hidden)
    fused = fuse_params(params, out_size)
    state = jax.random.normal(k_state, (B, T, in_size), jnp.float32)
    gru_hx = jax.random.normal(k_hx, (1, B, hidden), jnp.float32)

    pol, val, hx_out = jax.block_until_ready(
        gru_net_forward(fused, state, gru_hx, out_size))

    pol_ref, val_ref, hx_ref = jax.block_until_ready(
        gru_net_reference(params, state, gru_hx))

    assert pol.shape == (B, T, out_size)
    assert val.shape == (B, T, 1)
    assert hx_out.shape == (1, B, hidden)
    np.testing.assert_allclose(np.asarray(pol), np.asarray(pol_ref), atol=1e-4, rtol=1e-4)
    np.testing.assert_allclose(np.asarray(val), np.asarray(val_ref), atol=1e-4, rtol=1e-4)
    np.testing.assert_allclose(np.asarray(hx_out), np.asarray(hx_ref), atol=1e-4, rtol=1e-4)

    print("KERNEL_OK")
</pallas_src>

<mosaic_0001>
module attributes {stable_mosaic.version = 11 : i64} {
  func.func @_gru_net_kernel(%arg0: i32, %arg1: memref<8x8x8xf32, #tpu.memory_space<vmem>>, %arg2: memref<8x384xf32, #tpu.memory_space<vmem>>, %arg3: memref<1x384xf32, #tpu.memory_space<vmem>>, %arg4: memref<128x384xf32, #tpu.memory_space<vmem>>, %arg5: memref<1x128xf32, #tpu.memory_space<vmem>>, %arg6: memref<8x128xf32, #tpu.memory_space<vmem>>, %arg7: memref<128x64xf32, #tpu.memory_space<vmem>>, %arg8: memref<1x64xf32, #tpu.memory_space<vmem>>, %arg9: memref<64x128xf32, #tpu.memory_space<vmem>>, %arg10: memref<1x128xf32, #tpu.memory_space<vmem>>, %arg11: memref<8x8x128xf32, #tpu.memory_space<vmem>>, %arg12: memref<8x128xf32, #tpu.memory_space<vmem>>, %arg13: memref<8x8x384xf32, #tpu.memory_space<vmem>>, %arg14: memref<8x8x128xf32, #tpu.memory_space<vmem>>) attributes {dimension_semantics = [#tpu.dimension_semantics<parallel>], iteration_bounds = array<i64: 1>, scalar_prefetch = 0 : i64, scratch_operands = 2 : i64, tpu.core_type = #tpu.core_type<tc>, window_params = [{transform_indices = @transform_0, window_bounds = array<i64: 8, 8, 8>}, {pipeline_mode = #tpu.pipeline_mode<synchronous>, transform_indices = @transform_1, window_bounds = array<i64: 8, 384>}, {pipeline_mode = #tpu.pipeline_mode<synchronous>, transform_indices = @transform_2, window_bounds = array<i64: 1, 384>}, {pipeline_mode = #tpu.pipeline_mode<synchronous>, transform_indices = @transform_3, window_bounds = array<i64: 128, 384>}, {pipeline_mode = #tpu.pipeline_mode<synchronous>, transform_indices = @transform_4, window_bounds = array<i64: 1, 128>}, {transform_indices = @transform_5, window_bounds = array<i64: 8, 128>}, {pipeline_mode = #tpu.pipeline_mode<synchronous>, transform_indices = @transform_6, window_bounds = array<i64: 128, 64>}, {pipeline_mode = #tpu.pipeline_mode<synchronous>, transform_indices = @transform_7, window_bounds = array<i64: 1, 64>}, {pipeline_mode = #tpu.pipeline_mode<synchronous>, transform_indices = @transform_8, window_bounds = array<i64: 64, 128>}, {pipeline_mode = #tpu.pipeline_mode<synchronous>, transform_indices = @transform_9, window_bounds = array<i64: 1, 128>}, {transform_indices = @transform_10, window_bounds = array<i64: 8, 8, 128>}, {transform_indices = @transform_11, window_bounds = array<i64: 8, 128>}]} {
    %c0 = arith.constant 0 : index
    %c0_0 = arith.constant 0 : index
    %c0_1 = arith.constant 0 : index
    %0 = vector.load %arg1[%c0, %c0_0, %c0_1] : memref<8x8x8xf32, #tpu.memory_space<vmem>>, vector<8x8x8xf32>
    %1 = vector.shape_cast %0 : vector<8x8x8xf32> to vector<64x8xf32>
    %c0_2 = arith.constant 0 : index
    %c0_3 = arith.constant 0 : index
    %2 = vector.load %arg2[%c0_2, %c0_3] : memref<8x384xf32, #tpu.memory_space<vmem>>, vector<8x384xf32>
    %cst = arith.constant dense<0.000000e+00> : vector<64x384xf32>
    %3 = tpu.matmul %1, %2, %cst {dimension_numbers = #tpu.dot_dimension_numbers<[1], [0], [0], [1], [0, 0, 1, 1], [], []>} : vector<64x8xf32>, vector<8x384xf32>, vector<64x384xf32> -> vector<64x384xf32>
    %c0_4 = arith.constant 0 : index
    %c0_5 = arith.constant 0 : index
    %4 = vector.load %arg3[%c0_4, %c0_5] : memref<1x384xf32, #tpu.memory_space<vmem>>, vector<1x384xf32>
    %5 = vector.broadcast %4 : vector<1x384xf32> to vector<64x384xf32>
    %6 = arith.addf %3, %5 : vector<64x384xf32>
    %7 = vector.shape_cast %6 : vector<64x384xf32> to vector<8x8x384xf32>
    %c0_6 = arith.constant 0 : index
    %c0_7 = arith.constant 0 : index
    %c0_8 = arith.constant 0 : index
    %8 = vector.load %arg13[%c0_6, %c0_7, %c0_8] : memref<8x8x384xf32, #tpu.memory_space<vmem>>, vector<8x8x384xf32>
    tpu.vector_store %arg13[%c0_6, %c0_7, %c0_8], %7 {strides = array<i32>} : memref<8x8x384xf32, #tpu.memory_space<vmem>>, vector<8x8x384xf32>,
    %c0_9 = arith.constant 0 : index
    %c0_10 = arith.constant 0 : index
    %9 = vector.load %arg4[%c0_9, %c0_10] : memref<128x384xf32, #tpu.memory_space<vmem>>, vector<128x384xf32>
    %c0_11 = arith.constant 0 : index
    %c0_12 = arith.constant 0 : index
    %10 = vector.load %arg5[%c0_11, %c0_12] : memref<1x128xf32, #tpu.memory_space<vmem>>, vector<1x128xf32>
    %11 = vector.shape_cast %10 : vector<1x128xf32> to vector<1x128xf32>
    %12 = vector.broadcast %11 : vector<1x128xf32> to vector<8x128xf32>
    %c0_13 = arith.constant 0 : index
    %c0_14 = arith.constant 0 : index
    %13 = vector.load %arg6[%c0_13, %c0_14] : memref<8x128xf32, #tpu.memory_space<vmem>>, vector<8x128xf32>
    %c0_i32 = arith.constant 0 : i32
    %14 = arith.index_cast %c0_i32 : i32 to index
    %c0_15 = arith.constant 0 : index
    %c0_16 = arith.constant 0 : index
    %15 = vector.load %arg13[%14, %c0_15, %c0_16] : memref<8x8x384xf32, #tpu.memory_space<vmem>>, vector<1x8x384xf32>
    %16 = vector.shape_cast %15 : vector<1x8x384xf32> to vector<8x384xf32>
    %cst_17 = arith.constant dense<0.000000e+00> : vector<8x384xf32>
    %17 = tpu.matmul %13, %9, %cst_17 {dimension_numbers = #tpu.dot_dimension_numbers<[1], [0], [0], [1], [0, 0, 1, 1], [], []>} : vector<8x128xf32>, vector<128x384xf32>, vector<8x384xf32> -> vector<8x384xf32>
    %18 = vector.extract_strided_slice %16 {offsets = [0, 0], sizes = [8, 256], strides = [1, 1]} : vector<8x384xf32> to vector<8x256xf32>
    %19 = vector.extract_strided_slice %17 {offsets = [0, 0], sizes = [8, 256], strides = [1, 1]} : vector<8x384xf32> to vector<8x256xf32>
    %20 = arith.addf %18, %19 : vector<8x256xf32>
    %21 = arith.negf %20 : vector<8x256xf32>
    %22 = math.exp %21 : vector<8x256xf32>
    %cst_18 = arith.constant 1.000000e+00 : f32
    %23 = vector.broadcast %cst_18 : f32 to vector<8x256xf32>
    %24 = arith.addf %23, %22 : vector<8x256xf32>
    %25 = arith.divf %23, %24 : vector<8x256xf32>
    %26 = vector.extract_strided_slice %25 {offsets = [0, 0], sizes = [8, 128], strides = [1, 1]} : vector<8x256xf32> to vector<8x128xf32>
    %27 = vector.extract_strided_slice %25 {offsets = [0, 128], sizes = [8, 128], strides = [1, 1]} : vector<8x256xf32> to vector<8x128xf32>
    %28 = vector.extract_strided_slice %16 {offsets = [0, 256], sizes = [8, 128], strides = [1, 1]} : vector<8x384xf32> to vector<8x128xf32>
    %29 = vector.extract_strided_slice %17 {offsets = [0, 256], sizes = [8, 128], strides = [1, 1]} : vector<8x384xf32> to vector<8x128xf32>
    %30 = arith.addf %29, %12 : vector<8x128xf32>
    %31 = arith.mulf %26, %30 : vector<8x128xf32>
    %32 = arith.addf %28, %31 : vector<8x128xf32>
    %33 = math.tanh %32 : vector<8x128xf32>
    %34 = arith.subf %13, %33 : vector<8x128xf32>
    %35 = arith.mulf %27, %34 : vector<8x128xf32>
    %36 = arith.addf %33, %35 : vector<8x128xf32>
    %37 = arith.index_cast %c0_i32 : i32 to index
    %c0_19 = arith.constant 0 : index
    %c0_20 = arith.constant 0 : index
    %38 = vector.load %arg14[%37, %c0_19, %c0_20] : memref<8x8x128xf32, #tpu.memory_space<vmem>>, vector<1x8x128xf32>
    %39 = vector.shape_cast %38 : vector<1x8x128xf32> to vector<8x128xf32>
    %40 = vector.shape_cast %36 : vector<8x128xf32> to vector<1x8x128xf32>
    tpu.vector_store %arg14[%37, %c0_19, %c0_20], %40 {strides = array<i32>} : memref<8x8x128xf32, #tpu.memory_space<vmem>>, vector<1x8x128xf32>,
    %c1_i32 = arith.constant 1 : i32
    %41 = arith.index_cast %c1_i32 : i32 to index
    %c0_21 = arith.constant 0 : index
    %c0_22 = arith.constant 0 : index
    %42 = vector.load %arg13[%41, %c0_21, %c0_22] : memref<8x8x384xf32, #tpu.memory_space<vmem>>, vector<1x8x384xf32>
    %43 = vector.shape_cast %42 : vector<1x8x384xf32> to vector<8x384xf32>
    %cst_23 = arith.constant dense<0.000000e+00> : vector<8x384xf32>
    %44 = tpu.matmul %36, %9, %cst_23 {dimension_numbers = #tpu.dot_dimension_numbers<[1], [0], [0], [1], [0, 0, 1, 1], [], []>} : vector<8x128xf32>, vector<128x384xf32>, vector<8x384xf32> -> vector<8x384xf32>
    %45 = vector.extract_strided_slice %43 {offsets = [0, 0], sizes = [8, 256], strides = [1, 1]} : vector<8x384xf32> to vector<8x256xf32>
    %46 = vector.extract_strided_slice %44 {offsets = [0, 0], sizes = [8, 256], strides = [1, 1]} : vector<8x384xf32> to vector<8x256xf32>
    %47 = arith.addf %45, %46 : vector<8x256xf32>
    %48 = arith.negf %47 : vector<8x256xf32>
    %49 = math.exp %48 : vector<8x256xf32>
    %cst_24 = arith.constant 1.000000e+00 : f32
    %50 = vector.broadcast %cst_24 : f32 to vector<8x256xf32>
    %51 = arith.addf %50, %49 : vector<8x256xf32>
    %52 = arith.divf %50, %51 : vector<8x256xf32>
    %53 = vector.extract_strided_slice %52 {offsets = [0, 0], sizes = [8, 128], strides = [1, 1]} : vector<8x256xf32> to vector<8x128xf32>
    %54 = vector.extract_strided_slice %52 {offsets = [0, 128], sizes = [8, 128], strides = [1, 1]} : vector<8x256xf32> to vector<8x128xf32>
    %55 = vector.extract_strided_slice %43 {offsets = [0, 256], sizes = [8, 128], strides = [1, 1]} : vector<8x384xf32> to vector<8x128xf32>
    %56 = vector.extract_strided_slice %44 {offsets = [0, 256], sizes = [8, 128], strides = [1, 1]} : vector<8x384xf32> to vector<8x128xf32>
    %57 = arith.addf %56, %12 : vector<8x128xf32>
    %58 = arith.mulf %53, %57 : vector<8x128xf32>
    %59 = arith.addf %55, %58 : vector<8x128xf32>
    %60 = math.tanh %59 : vector<8x128xf32>
    %61 = arith.subf %36, %60 : vector<8x128xf32>
    %62 = arith.mulf %54, %61 : vector<8x128xf32>
    %63 = arith.addf %60, %62 : vector<8x128xf32>
    %64 = arith.index_cast %c1_i32 : i32 to index
    %c0_25 = arith.constant 0 : index
    %c0_26 = arith.constant 0 : index
    %65 = vector.load %arg14[%64, %c0_25, %c0_26] : memref<8x8x128xf32, #tpu.memory_space<vmem>>, vector<1x8x128xf32>
    %66 = vector.shape_cast %65 : vector<1x8x128xf32> to vector<8x128xf32>
    %67 = vector.shape_cast %63 : vector<8x128xf32> to vector<1x8x128xf32>
    tpu.vector_store %arg14[%64, %c0_25, %c0_26], %67 {strides = array<i32>} : memref<8x8x128xf32, #tpu.memory_space<vmem>>, vector<1x8x128xf32>,
    %c2_i32 = arith.constant 2 : i32
    %68 = arith.index_cast %c2_i32 : i32 to index
    %c0_27 = arith.constant 0 : index
    %c0_28 = arith.constant 0 : index
    %69 = vector.load %arg13[%68, %c0_27, %c0_28] : memref<8x8x384xf32, #tpu.memory_space<vmem>>, vector<1x8x384xf32>
    %70 = vector.shape_cast %69 : vector<1x8x384xf32> to vector<8x384xf32>
    %cst_29 = arith.constant dense<0.000000e+00> : vector<8x384xf32>
    %71 = tpu.matmul %63, %9, %cst_29 {dimension_numbers = #tpu.dot_dimension_numbers<[1], [0], [0], [1], [0, 0, 1, 1], [], []>} : vector<8x128xf32>, vector<128x384xf32>, vector<8x384xf32> -> vector<8x384xf32>
    %72 = vector.extract_strided_slice %70 {offsets = [0, 0], sizes = [8, 256], strides = [1, 1]} : vector<8x384xf32> to vector<8x256xf32>
    %73 = vector.extract_strided_slice %71 {offsets = [0, 0], sizes = [8, 256], strides = [1, 1]} : vector<8x384xf32> to vector<8x256xf32>
    %74 = arith.addf %72, %73 : vector<8x256xf32>
    %75 = arith.negf %74 : vector<8x256xf32>
    %76 = math.exp %75 : vector<8x256xf32>
    %cst_30 = arith.constant 1.000000e+00 : f32
    %77 = vector.broadcast %cst_30 : f32 to vector<8x256xf32>
    %78 = arith.addf %77, %76 : vector<8x256xf32>
    %79 = arith.divf %77, %78 : vector<8x256xf32>
    %80 = vector.extract_strided_slice %79 {offsets = [0, 0], sizes = [8, 128], strides = [1, 1]} : vector<8x256xf32> to vector<8x128xf32>
    %81 = vector.extract_strided_slice %79 {offsets = [0, 128], sizes = [8, 128], strides = [1, 1]} : vector<8x256xf32> to vector<8x128xf32>
    %82 = vector.extract_strided_slice %70 {offsets = [0, 256], sizes = [8, 128], strides = [1, 1]} : vector<8x384xf32> to vector<8x128xf32>
    %83 = vector.extract_strided_slice %71 {offsets = [0, 256], sizes = [8, 128], strides = [1, 1]} : vector<8x384xf32> to vector<8x128xf32>
    %84 = arith.addf %83, %12 : vector<8x128xf32>
    %85 = arith.mulf %80, %84 : vector<8x128xf32>
    %86 = arith.addf %82, %85 : vector<8x128xf32>
    %87 = math.tanh %86 : vector<8x128xf32>
    %88 = arith.subf %63, %87 : vector<8x128xf32>
    %89 = arith.mulf %81, %88 : vector<8x128xf32>
    %90 = arith.addf %87, %89 : vector<8x128xf32>
    %91 = arith.index_cast %c2_i32 : i32 to index
    %c0_31 = arith.constant 0 : index
    %c0_32 = arith.constant 0 : index
    %92 = vector.load %arg14[%91, %c0_31, %c0_32] : memref<8x8x128xf32, #tpu.memory_space<vmem>>, vector<1x8x128xf32>
    %93 = vector.shape_cast %92 : vector<1x8x128xf32> to vector<8x128xf32>
    %94 = vector.shape_cast %90 : vector<8x128xf32> to vector<1x8x128xf32>
    tpu.vector_store %arg14[%91, %c0_31, %c0_32], %94 {strides = array<i32>} : memref<8x8x128xf32, #tpu.memory_space<vmem>>, vector<1x8x128xf32>,
    %c3_i32 = arith.constant 3 : i32
    %95 = arith.index_cast %c3_i32 : i32 to index
    %c0_33 = arith.constant 0 : index
    %c0_34 = arith.constant 0 : index
    %96 = vector.load %arg13[%95, %c0_33, %c0_34] : memref<8x8x384xf32, #tpu.memory_space<vmem>>, vector<1x8x384xf32>
    %97 = vector.shape_cast %96 : vector<1x8x384xf32> to vector<8x384xf32>
    %cst_35 = arith.constant dense<0.000000e+00> : vector<8x384xf32>
    %98 = tpu.matmul %90, %9, %cst_35 {dimension_numbers = #tpu.dot_dimension_numbers<[1], [0], [0], [1], [0, 0, 1, 1], [], []>} : vector<8x128xf32>, vector<128x384xf32>, vector<8x384xf32> -> vector<8x384xf32>
    %99 = vector.extract_strided_slice %97 {offsets = [0, 0], sizes = [8, 256], strides = [1, 1]} : vector<8x384xf32> to vector<8x256xf32>
    %100 = vector.extract_strided_slice %98 {offsets = [0, 0], sizes = [8, 256], strides = [1, 1]} : vector<8x384xf32> to vector<8x256xf32>
    %101 = arith.addf %99, %100 : vector<8x256xf32>
    %102 = arith.negf %101 : vector<8x256xf32>
    %103 = math.exp %102 : vector<8x256xf32>
    %cst_36 = arith.constant 1.000000e+00 : f32
    %104 = vector.broadcast %cst_36 : f32 to vector<8x256xf32>
    %105 = arith.addf %104, %103 : vector<8x256xf32>
    %106 = arith.divf %104, %105 : vector<8x256xf32>
    %107 = vector.extract_strided_slice %106 {offsets = [0, 0], sizes = [8, 128], strides = [1, 1]} : vector<8x256xf32> to vector<8x128xf32>
    %108 = vector.extract_strided_slice %106 {offsets = [0, 128], sizes = [8, 128], strides = [1, 1]} : vector<8x256xf32> to vector<8x128xf32>
    %109 = vector.extract_strided_slice %97 {offsets = [0, 256], sizes = [8, 128], strides = [1, 1]} : vector<8x384xf32> to vector<8x128xf32>
    %110 = vector.extract_strided_slice %98 {offsets = [0, 256], sizes = [8, 128], strides = [1, 1]} : vector<8x384xf32> to vector<8x128xf32>
    %111 = arith.addf %110, %12 : vector<8x128xf32>
    %112 = arith.mulf %107, %111 : vector<8x128xf32>
    %113 = arith.addf %109, %112 : vector<8x128xf32>
    %114 = math.tanh %113 : vector<8x128xf32>
    %115 = arith.subf %90, %114 : vector<8x128xf32>
    %116 = arith.mulf %108, %115 : vector<8x128xf32>
    %117 = arith.addf %114, %116 : vector<8x128xf32>
    %118 = arith.index_cast %c3_i32 : i32 to index
    %c0_37 = arith.constant 0 : index
    %c0_38 = arith.constant 0 : index
    %119 = vector.load %arg14[%118, %c0_37, %c0_38] : memref<8x8x128xf32, #tpu.memory_space<vmem>>, vector<1x8x128xf32>
    %120 = vector.shape_cast %119 : vector<1x8x128xf32> to vector<8x128xf32>
    %121 = vector.shape_cast %117 : vector<8x128xf32> to vector<1x8x128xf32>
    tpu.vector_store %arg14[%118, %c0_37, %c0_38], %121 {strides = array<i32>} : memref<8x8x128xf32, #tpu.memory_space<vmem>>, vector<1x8x128xf32>,
    %c4_i32 = arith.constant 4 : i32
    %122 = arith.index_cast %c4_i32 : i32 to index
    %c0_39 = arith.constant 0 : index
    %c0_40 = arith.constant 0 : index
    %123 = vector.load %arg13[%122, %c0_39, %c0_40] : memref<8x8x384xf32, #tpu.memory_space<vmem>>, vector<1x8x384xf32>
    %124 = vector.shape_cast %123 : vector<1x8x384xf32> to vector<8x384xf32>
    %cst_41 = arith.constant dense<0.000000e+00> : vector<8x384xf32>
    %125 = tpu.matmul %117, %9, %cst_41 {dimension_numbers = #tpu.dot_dimension_numbers<[1], [0], [0], [1], [0, 0, 1, 1], [], []>} : vector<8x128xf32>, vector<128x384xf32>, vector<8x384xf32> -> vector<8x384xf32>
    %126 = vector.extract_strided_slice %124 {offsets = [0, 0], sizes = [8, 256], strides = [1, 1]} : vector<8x384xf32> to vector<8x256xf32>
    %127 = vector.extract_strided_slice %125 {offsets = [0, 0], sizes = [8, 256], strides = [1, 1]} : vector<8x384xf32> to vector<8x256xf32>
    %128 = arith.addf %126, %127 : vector<8x256xf32>
    %129 = arith.negf %128 : vector<8x256xf32>
    %130 = math.exp %129 : vector<8x256xf32>
    %cst_42 = arith.constant 1.000000e+00 : f32
    %131 = vector.broadcast %cst_42 : f32 to vector<8x256xf32>
    %132 = arith.addf %131, %130 : vector<8x256xf32>
    %133 = arith.divf %131, %132 : vector<8x256xf32>
    %134 = vector.extract_strided_slice %133 {offsets = [0, 0], sizes = [8, 128], strides = [1, 1]} : vector<8x256xf32> to vector<8x128xf32>
    %135 = vector.extract_strided_slice %133 {offsets = [0, 128], sizes = [8, 128], strides = [1, 1]} : vector<8x256xf32> to vector<8x128xf32>
    %136 = vector.extract_strided_slice %124 {offsets = [0, 256], sizes = [8, 128], strides = [1, 1]} : vector<8x384xf32> to vector<8x128xf32>
    %137 = vector.extract_strided_slice %125 {offsets = [0, 256], sizes = [8, 128], strides = [1, 1]} : vector<8x384xf32> to vector<8x128xf32>
    %138 = arith.addf %137, %12 : vector<8x128xf32>
    %139 = arith.mulf %134, %138 : vector<8x128xf32>
    %140 = arith.addf %136, %139 : vector<8x128xf32>
    %141 = math.tanh %140 : vector<8x128xf32>
    %142 = arith.subf %117, %141 : vector<8x128xf32>
    %143 = arith.mulf %135, %142 : vector<8x128xf32>
    %144 = arith.addf %141, %143 : vector<8x128xf32>
    %145 = arith.index_cast %c4_i32 : i32 to index
    %c0_43 = arith.constant 0 : index
    %c0_44 = arith.constant 0 : index
    %146 = vector.load %arg14[%145, %c0_43, %c0_44] : memref<8x8x128xf32, #tpu.memory_space<vmem>>, vector<1x8x128xf32>
    %147 = vector.shape_cast %146 : vector<1x8x128xf32> to vector<8x128xf32>
    %148 = vector.shape_cast %144 : vector<8x128xf32> to vector<1x8x128xf32>
    tpu.vector_store %arg14[%145, %c0_43, %c0_44], %148 {strides = array<i32>} : memref<8x8x128xf32, #tpu.memory_space<vmem>>, vector<1x8x128xf32>,
    %c5_i32 = arith.constant 5 : i32
    %149 = arith.index_cast %c5_i32 : i32 to index
    %c0_45 = arith.constant 0 : index
    %c0_46 = arith.constant 0 : index
    %150 = vector.load %arg13[%149, %c0_45, %c0_46] : memref<8x8x384xf32, #tpu.memory_space<vmem>>, vector<1x8x384xf32>
    %151 = vector.shape_cast %150 : vector<1x8x384xf32> to vector<8x384xf32>
    %cst_47 = arith.constant dense<0.000000e+00> : vector<8x384xf32>
    %152 = tpu.matmul %144, %9, %cst_47 {dimension_numbers = #tpu.dot_dimension_numbers<[1], [0], [0], [1], [0, 0, 1, 1], [], []>} : vector<8x128xf32>, vector<128x384xf32>, vector<8x384xf32> -> vector<8x384xf32>
    %153 = vector.extract_strided_slice %151 {offsets = [0, 0], sizes = [8, 256], strides = [1, 1]} : vector<8x384xf32> to vector<8x256xf32>
    %154 = vector.extract_strided_slice %152 {offsets = [0, 0], sizes = [8, 256], strides = [1, 1]} : vector<8x384xf32> to vector<8x256xf32>
    %155 = arith.addf %153, %154 : vector<8x256xf32>
    %156 = arith.negf %155 : vector<8x256xf32>
    %157 = math.exp %156 : vector<8x256xf32>
    %cst_48 = arith.constant 1.000000e+00 : f32
    %158 = vector.broadcast %cst_48 : f32 to vector<8x256xf32>
    %159 = arith.addf %158, %157 : vector<8x256xf32>
    %160 = arith.divf %158, %159 : vector<8x256xf32>
    %161 = vector.extract_strided_slice %160 {offsets = [0, 0], sizes = [8, 128], strides = [1, 1]} : vector<8x256xf32> to vector<8x128xf32>
    %162 = vector.extract_strided_slice %160 {offsets = [0, 128], sizes = [8, 128], strides = [1, 1]} : vector<8x256xf32> to vector<8x128xf32>
    %163 = vector.extract_strided_slice %151 {offsets = [0, 256], sizes = [8, 128], strides = [1, 1]} : vector<8x384xf32> to vector<8x128xf32>
    %164 = vector.extract_strided_slice %152 {offsets = [0, 256], sizes = [8, 128], strides = [1, 1]} : vector<8x384xf32> to vector<8x128xf32>
    %165 = arith.addf %164, %12 : vector<8x128xf32>
    %166 = arith.mulf %161, %165 : vector<8x128xf32>
    %167 = arith.addf %163, %166 : vector<8x128xf32>
    %168 = math.tanh %167 : vector<8x128xf32>
    %169 = arith.subf %144, %168 : vector<8x128xf32>
    %170 = arith.mulf %162, %169 : vector<8x128xf32>
    %171 = arith.addf %168, %170 : vector<8x128xf32>
    %172 = arith.index_cast %c5_i32 : i32 to index
    %c0_49 = arith.constant 0 : index
    %c0_50 = arith.constant 0 : index
    %173 = vector.load %arg14[%172, %c0_49, %c0_50] : memref<8x8x128xf32, #tpu.memory_space<vmem>>, vector<1x8x128xf32>
    %174 = vector.shape_cast %173 : vector<1x8x128xf32> to vector<8x128xf32>
    %175 = vector.shape_cast %171 : vector<8x128xf32> to vector<1x8x128xf32>
    tpu.vector_store %arg14[%172, %c0_49, %c0_50], %175 {strides = array<i32>} : memref<8x8x128xf32, #tpu.memory_space<vmem>>, vector<1x8x128xf32>,
    %c6_i32 = arith.constant 6 : i32
    %176 = arith.index_cast %c6_i32 : i32 to index
    %c0_51 = arith.constant 0 : index
    %c0_52 = arith.constant 0 : index
    %177 = vector.load %arg13[%176, %c0_51, %c0_52] : memref<8x8x384xf32, #tpu.memory_space<vmem>>, vector<1x8x384xf32>
    %178 = vector.shape_cast %177 : vector<1x8x384xf32> to vector<8x384xf32>
    %cst_53 = arith.constant dense<0.000000e+00> : vector<8x384xf32>
    %179 = tpu.matmul %171, %9, %cst_53 {dimension_numbers = #tpu.dot_dimension_numbers<[1], [0], [0], [1], [0, 0, 1, 1], [], []>} : vector<8x128xf32>, vector<128x384xf32>, vector<8x384xf32> -> vector<8x384xf32>
    %180 = vector.extract_strided_slice %178 {offsets = [0, 0], sizes = [8, 256], strides = [1, 1]} : vector<8x384xf32> to vector<8x256xf32>
    %181 = vector.extract_strided_slice %179 {offsets = [0, 0], sizes = [8, 256], strides = [1, 1]} : vector<8x384xf32> to vector<8x256xf32>
    %182 = arith.addf %180, %181 : vector<8x256xf32>
    %183 = arith.negf %182 : vector<8x256xf32>
    %184 = math.exp %183 : vector<8x256xf32>
    %cst_54 = arith.constant 1.000000e+00 : f32
    %185 = vector.broadcast %cst_54 : f32 to vector<8x256xf32>
    %186 = arith.addf %185, %184 : vector<8x256xf32>
    %187 = arith.divf %185, %186 : vector<8x256xf32>
    %188 = vector.extract_strided_slice %187 {offsets = [0, 0], sizes = [8, 128], strides = [1, 1]} : vector<8x256xf32> to vector<8x128xf32>
    %189 = vector.extract_strided_slice %187 {offsets = [0, 128], sizes = [8, 128], strides = [1, 1]} : vector<8x256xf32> to vector<8x128xf32>
    %190 = vector.extract_strided_slice %178 {offsets = [0, 256], sizes = [8, 128], strides = [1, 1]} : vector<8x384xf32> to vector<8x128xf32>
    %191 = vector.extract_strided_slice %179 {offsets = [0, 256], sizes = [8, 128], strides = [1, 1]} : vector<8x384xf32> to vector<8x128xf32>
    %192 = arith.addf %191, %12 : vector<8x128xf32>
    %193 = arith.mulf %188, %192 : vector<8x128xf32>
    %194 = arith.addf %190, %193 : vector<8x128xf32>
    %195 = math.tanh %194 : vector<8x128xf32>
    %196 = arith.subf %171, %195 : vector<8x128xf32>
    %197 = arith.mulf %189, %196 : vector<8x128xf32>
    %198 = arith.addf %195, %197 : vector<8x128xf32>
    %199 = arith.index_cast %c6_i32 : i32 to index
    %c0_55 = arith.constant 0 : index
    %c0_56 = arith.constant 0 : index
    %200 = vector.load %arg14[%199, %c0_55, %c0_56] : memref<8x8x128xf32, #tpu.memory_space<vmem>>, vector<1x8x128xf32>
    %201 = vector.shape_cast %200 : vector<1x8x128xf32> to vector<8x128xf32>
    %202 = vector.shape_cast %198 : vector<8x128xf32> to vector<1x8x128xf32>
    tpu.vector_store %arg14[%199, %c0_55, %c0_56], %202 {strides = array<i32>} : memref<8x8x128xf32, #tpu.memory_space<vmem>>, vector<1x8x128xf32>,
    %c7_i32 = arith.constant 7 : i32
    %203 = arith.index_cast %c7_i32 : i32 to index
    %c0_57 = arith.constant 0 : index
    %c0_58 = arith.constant 0 : index
    %204 = vector.load %arg13[%203, %c0_57, %c0_58] : memref<8x8x384xf32, #tpu.memory_space<vmem>>, vector<1x8x384xf32>
    %205 = vector.shape_cast %204 : vector<1x8x384xf32> to vector<8x384xf32>
    %cst_59 = arith.constant dense<0.000000e+00> : vector<8x384xf32>
    %206 = tpu.matmul %198, %9, %cst_59 {dimension_numbers = #tpu.dot_dimension_numbers<[1], [0], [0], [1], [0, 0, 1, 1], [], []>} : vector<8x128xf32>, vector<128x384xf32>, vector<8x384xf32> -> vector<8x384xf32>
    %207 = vector.extract_strided_slice %205 {offsets = [0, 0], sizes = [8, 256], strides = [1, 1]} : vector<8x384xf32> to vector<8x256xf32>
    %208 = vector.extract_strided_slice %206 {offsets = [0, 0], sizes = [8, 256], strides = [1, 1]} : vector<8x384xf32> to vector<8x256xf32>
    %209 = arith.addf %207, %208 : vector<8x256xf32>
    %210 = arith.negf %209 : vector<8x256xf32>
    %211 = math.exp %210 : vector<8x256xf32>
    %cst_60 = arith.constant 1.000000e+00 : f32
    %212 = vector.broadcast %cst_60 : f32 to vector<8x256xf32>
    %213 = arith.addf %212, %211 : vector<8x256xf32>
    %214 = arith.divf %212, %213 : vector<8x256xf32>
    %215 = vector.extract_strided_slice %214 {offsets = [0, 0], sizes = [8, 128], strides = [1, 1]} : vector<8x256xf32> to vector<8x128xf32>
    %216 = vector.extract_strided_slice %214 {offsets = [0, 128], sizes = [8, 128], strides = [1, 1]} : vector<8x256xf32> to vector<8x128xf32>
    %217 = vector.extract_strided_slice %205 {offsets = [0, 256], sizes = [8, 128], strides = [1, 1]} : vector<8x384xf32> to vector<8x128xf32>
    %218 = vector.extract_strided_slice %206 {offsets = [0, 256], sizes = [8, 128], strides = [1, 1]} : vector<8x384xf32> to vector<8x128xf32>
    %219 = arith.addf %218, %12 : vector<8x128xf32>
    %220 = arith.mulf %215, %219 : vector<8x128xf32>
    %221 = arith.addf %217, %220 : vector<8x128xf32>
    %222 = math.tanh %221 : vector<8x128xf32>
    %223 = arith.subf %198, %222 : vector<8x128xf32>
    %224 = arith.mulf %216, %223 : vector<8x128xf32>
    %225 = arith.addf %222, %224 : vector<8x128xf32>
    %226 = arith.index_cast %c7_i32 : i32 to index
    %c0_61 = arith.constant 0 : index
    %c0_62 = arith.constant 0 : index
    %227 = vector.load %arg14[%226, %c0_61, %c0_62] : memref<8x8x128xf32, #tpu.memory_space<vmem>>, vector<1x8x128xf32>
    %228 = vector.shape_cast %227 : vector<1x8x128xf32> to vector<8x128xf32>
    %229 = vector.shape_cast %225 : vector<8x128xf32> to vector<1x8x128xf32>
    tpu.vector_store %arg14[%226, %c0_61, %c0_62], %229 {strides = array<i32>} : memref<8x8x128xf32, #tpu.memory_space<vmem>>, vector<1x8x128xf32>,
    %c8_i32 = arith.constant 8 : i32
    %c0_63 = arith.constant 0 : index
    %c0_64 = arith.constant 0 : index
    %230 = vector.load %arg12[%c0_63, %c0_64] : memref<8x128xf32, #tpu.memory_space<vmem>>, vector<8x128xf32>
    tpu.vector_store %arg12[%c0_63, %c0_64], %225 {strides = array<i32>} : memref<8x128xf32, #tpu.memory_space<vmem>>, vector<8x128xf32>,
    %c0_65 = arith.constant 0 : index
    %c0_66 = arith.constant 0 : index
    %c0_67 = arith.constant 0 : index
    %231 = vector.load %arg14[%c0_65, %c0_66, %c0_67] : memref<8x8x128xf32, #tpu.memory_space<vmem>>, vector<8x8x128xf32>
    %232 = vector.shape_cast %231 : vector<8x8x128xf32> to vector<64x128xf32>
    %c0_68 = arith.constant 0 : index
    %c0_69 = arith.constant 0 : index
    %233 = vector.load %arg7[%c0_68, %c0_69] : memref<128x64xf32, #tpu.memory_space<vmem>>, vector<128x64xf32>
    %cst_70 = arith.constant dense<0.000000e+00> : vector<64x64xf32>
    %234 = tpu.matmul %232, %233, %cst_70 {dimension_numbers = #tpu.dot_dimension_numbers<[1], [0], [0], [1], [0, 0, 1, 1], [], []>} : vector<64x128xf32>, vector<128x64xf32>, vector<64x64xf32> -> vector<64x64xf32>
    %c0_71 = arith.constant 0 : index
    %c0_72 = arith.constant 0 : index
    %235 = vector.load %arg8[%c0_71, %c0_72] : memref<1x64xf32, #tpu.memory_space<vmem>>, vector<1x64xf32>
    %236 = vector.broadcast %235 : vector<1x64xf32> to vector<64x64xf32>
    %237 = arith.addf %234, %236 : vector<64x64xf32>
    %cst_73 = arith.constant 0.000000e+00 : f32
    %238 = vector.broadcast %cst_73 : f32 to vector<64x64xf32>
    %239 = arith.maximumf %237, %238 : vector<64x64xf32>
    %c0_74 = arith.constant 0 : index
    %c0_75 = arith.constant 0 : index
    %240 = vector.load %arg9[%c0_74, %c0_75] : memref<64x128xf32, #tpu.memory_space<vmem>>, vector<64x128xf32>
    %cst_76 = arith.constant dense<0.000000e+00> : vector<64x128xf32>
    %241 = tpu.matmul %239, %240, %cst_76 {dimension_numbers = #tpu.dot_dimension_numbers<[1], [0], [0], [1], [0, 0, 1, 1], [], []>} : vector<64x64xf32>, vector<64x128xf32>, vector<64x128xf32> -> vector<64x128xf32>
    %c0_77 = arith.constant 0 : index
    %c0_78 = arith.constant 0 : index
    %242 = vector.load %arg10[%c0_77, %c0_78] : memref<1x128xf32, #tpu.memory_space<vmem>>, vector<1x128xf32>
    %243 = vector.broadcast %242 : vector<1x128xf32> to vector<64x128xf32>
    %244 = arith.addf %241, %243 : vector<64x128xf32>
    %245 = vector.shape_cast %244 : vector<64x128xf32> to vector<8x8x128xf32>
    %c0_79 = arith.constant 0 : index
    %c0_80 = arith.constant 0 : index
    %c0_81 = arith.constant 0 : index
    %246 = vector.load %arg11[%c0_79, %c0_80, %c0_81] : memref<8x8x128xf32, #tpu.memory_space<vmem>>, vector<8x8x128xf32>
    tpu.vector_store %arg11[%c0_79, %c0_80, %c0_81], %245 {strides = array<i32>} : memref<8x8x128xf32, #tpu.memory_space<vmem>>, vector<8x8x128xf32>,
    return
  }
  func.func @transform_0(%arg0: i32) -> (i32, i32, i32) {
    %c0_i32 = arith.constant 0 : i32
    %c0_i32_0 = arith.constant 0 : i32
    %c0_i32_1 = arith.constant 0 : i32
    return %c0_i32, %arg0, %c0_i32_0 : i32, i32, i32
  }
  func.func @transform_1(%arg0: i32) -> (i32, i32) {
    %c0_i32 = arith.constant 0 : i32
    %c0_i32_0 = arith.constant 0 : i32
    %c0_i32_1 = arith.constant 0 : i32
    return %c0_i32, %c0_i32_0 : i32, i32
  }
  func.func @transform_2(%arg0: i32) -> (i32, i32) {
    %c0_i32 = arith.constant 0 : i32
    %c0_i32_0 = arith.constant 0 : i32
    %c0_i32_1 = arith.constant 0 : i32
    return %c0_i32, %c0_i32_0 : i32, i32
  }
  func.func @transform_3(%arg0: i32) -> (i32, i32) {
    %c0_i32 = arith.constant 0 : i32
    %c0_i32_0 = arith.constant 0 : i32
    %c0_i32_1 = arith.constant 0 : i32
    return %c0_i32, %c0_i32_0 : i32, i32
  }
  func.func @transform_4(%arg0: i32) -> (i32, i32) {
    %c0_i32 = arith.constant 0 : i32
    %c0_i32_0 = arith.constant 0 : i32
    %c0_i32_1 = arith.constant 0 : i32
    return %c0_i32, %c0_i32_0 : i32, i32
  }
  func.func @transform_5(%arg0: i32) -> (i32, i32) {
    %c0_i32 = arith.constant 0 : i32
    %c0_i32_0 = arith.constant 0 : i32
    return %arg0, %c0_i32 : i32, i32
  }
  func.func @transform_6(%arg0: i32) -> (i32, i32) {
    %c0_i32 = arith.constant 0 : i32
    %c0_i32_0 = arith.constant 0 : i32
    %c0_i32_1 = arith.constant 0 : i32
    return %c0_i32, %c0_i32_0 : i32, i32
  }
  func.func @transform_7(%arg0: i32) -> (i32, i32) {
    %c0_i32 = arith.constant 0 : i32
    %c0_i32_0 = arith.constant 0 : i32
    %c0_i32_1 = arith.constant 0 : i32
    return %c0_i32, %c0_i32_0 : i32, i32
  }
  func.func @transform_8(%arg0: i32) -> (i32, i32) {
    %c0_i32 = arith.constant 0 : i32
    %c0_i32_0 = arith.constant 0 : i32
    %c0_i32_1 = arith.constant 0 : i32
    return %c0_i32, %c0_i32_0 : i32, i32
  }
  func.func @transform_9(%arg0: i32) -> (i32, i32) {
    %c0_i32 = arith.constant 0 : i32
    %c0_i32_0 = arith.constant 0 : i32
    %c0_i32_1 = arith.constant 0 : i32
    return %c0_i32, %c0_i32_0 : i32, i32
  }
  func.func @transform_10(%arg0: i32) -> (i32, i32, i32) {
    %c0_i32 = arith.constant 0 : i32
    %c0_i32_0 = arith.constant 0 : i32
    %c0_i32_1 = arith.constant 0 : i32
    return %c0_i32, %arg0, %c0_i32_0 : i32, i32, i32
  }
  func.func @transform_11(%arg0: i32) -> (i32, i32) {
    %c0_i32 = arith.constant 0 : i32
    %c0_i32_0 = arith.constant 0 : i32
    return %arg0, %c0_i32 : i32, i32
  }
}

</mosaic_0001>

<llo_original>
// kernel: tpu_custom_call.1
$region0: #{tpu_custom_call.1}
  #allocation0 [shape = 'u32[]', space=smem, size = 0x4, offset = 0x4, fixed_abs, tag = 'smem constant byte address 0x4 - core index']
  #allocation1 [shape = 'u32[72,128]{1,0:T(1,128)}', space=vmem, size = 0x9000, scoped, tag = 'internal scratch']
  #allocation2 [shape = 'f32[8,8,384]{2,1,0:T(8,128)}', space=vmem, size = 0x18000, scoped, tag = 'scratch operand']
  #allocation3 [shape = 'f32[8,8,128]{2,1,0:T(8,128)}', space=vmem, size = 0x8000, scoped, tag = 'scratch operand']
  %s0 = inlined_call_operand.vmem [shape: f32[8,8,8], index: 0, kind: input, shape index: {}]
  %s1 = inlined_call_operand.vmem [shape: f32[8,384], index: 1, kind: input, shape index: {}]
  %s2 = inlined_call_operand.vmem [shape: f32[1,384], index: 2, kind: input, shape index: {}]
  %s3 = inlined_call_operand.hbm [shape: f32[128,384], index: 3, kind: input, shape index: {}]
  %s4 = inlined_call_operand.vmem [shape: f32[1,128], index: 4, kind: input, shape index: {}]
  %s5 = inlined_call_operand.vmem [shape: f32[8,128], index: 5, kind: input, shape index: {}]
  %s6 = inlined_call_operand.vmem [shape: f32[128,64], index: 6, kind: input, shape index: {}]
  %s7 = inlined_call_operand.vmem [shape: f32[1,64], index: 7, kind: input, shape index: {}]
  %s8 = inlined_call_operand.vmem [shape: f32[64,128], index: 8, kind: input, shape index: {}]
  %s9 = inlined_call_operand.vmem [shape: f32[1,128], index: 9, kind: input, shape index: {}]
  %s10 = inlined_call_operand.hbm [shape: f32[8,8,128], index: 10, kind: output, shape index: {0}]
  %s11 = inlined_call_operand.hbm [shape: f32[8,128], index: 11, kind: output, shape index: {1}]
  %12 = xla_tuple %s10, %s11
  %s13 = sld [smem:[#allocation0]]
  $region62: #{tpu_custom_call.1} parent=0
    _
  %s15 = ssub.s32 1, %s13
  %s16 = scalar_select 0, %s15, %s13
  $region1: #{tpu_custom_call.1} parent=0
    #allocation4 [shape = 'u8[196608]{0}', space=vmem, size = 0x30000, scoped, tag = 'input window, operand 3, single buffered']
    #allocation5 [shape = 's32[1]{0}', space=sflag, size = 0x4, scoped, tag = 'scoped memory for tpu_custom_call.1']
    #allocation6 [shape = 's32[1]{0}', space=sflag, size = 0x4, scoped, tag = 'scoped memory for tpu_custom_call.1']
    #allocation7 [shape = 'u8[32768]{0}', space=vmem, size = 0x8000, scoped, tag = 'output window, operand 0, single buffered']
    #allocation8 [shape = 'u8[4096]{0}', space=vmem, size = 0x1000, scoped, tag = 'output window, operand 1, single buffered']
    #allocation9 [shape = 's32[1]{0}', space=sflag, size = 0x4, scoped, tag = 'scoped memory for tpu_custom_call.1']
    %17 = vsyncpa [#allocation5], 0
    %18 = vsyncpa [#allocation6], 0
    %19 = vsyncpa [#allocation9], 0
    // Predicated region
    $region2: #{tpu_custom_call.1} parent=1 // pred_check
      _
    $region3: #{tpu_custom_call.1} parent=1 // pred_check_branch
      %21 = sbr.rel (0) target = $region5
    $region4: #{tpu_custom_call.1} parent=1 // pred_region
      _
    $region5: #{tpu_custom_call.1} parent=1 // pred_fallthru
      _
    // Predicated region
    $region6: #{tpu_custom_call.1} parent=1 // pred_check
      _
    $region7: #{tpu_custom_call.1} parent=1 // pred_check_branch
      %23 = sbr.rel (0) target = $region9
    $region8: #{tpu_custom_call.1} parent=1 // pred_region
      _
    $region9: #{tpu_custom_call.1} parent=1 // pred_fallthru
      _
    // Predicated region
    $region10: #{tpu_custom_call.1} parent=1 // pred_check
      _
    $region11: #{tpu_custom_call.1} parent=1 // pred_check_branch
      %25 = sbr.rel (0) target = $region13
    $region12: #{tpu_custom_call.1} parent=1 // pred_region
      _
    $region13: #{tpu_custom_call.1} parent=1 // pred_fallthru
      _
    // Predicated region
    $region14: #{tpu_custom_call.1} parent=1 // pred_check
      _
    $region15: #{tpu_custom_call.1} parent=1 // pred_check_branch
      %27 = sbr.rel (0) target = $region17
    $region16: #{tpu_custom_call.1} parent=1 // pred_region
      %29 = vsyncadd [#allocation5], 0
      %s30 = sshll.u32 %s3, 4
      %s31 = int_to_ptr.hbm [resolvable:$true] %s30
      %s32 = sshll.u32 [#allocation4], 4
      %s33 = int_to_ptr.vmem [resolvable:$true] %s32
      %38 = dma.hbm_to_vmem [thread:$0]  %s31, 6144, %s33, [#allocation5], 384, 384, 24
    $region17: #{tpu_custom_call.1} parent=1 // pred_fallthru
      _
    // Predicated region
    $region18: #{tpu_custom_call.1} parent=1 // pred_check
      _
    $region19: #{tpu_custom_call.1} parent=1 // pred_check_branch
      %40 = sbr.rel (0) target = $region21
    $region20: #{tpu_custom_call.1} parent=1 // pred_region
      _
    $region21: #{tpu_custom_call.1} parent=1 // pred_fallthru
      _
    // Predicated region
    $region22: #{tpu_custom_call.1} parent=1 // pred_check
      _
    $region23: #{tpu_custom_call.1} parent=1 // pred_check_branch
      %42 = sbr.rel (0) target = $region25
    $region24: #{tpu_custom_call.1} parent=1 // pred_region
      _
    $region25: #{tpu_custom_call.1} parent=1 // pred_fallthru
      _
    // Predicated region
    $region26: #{tpu_custom_call.1} parent=1 // pred_check
      _
    $region27: #{tpu_custom_call.1} parent=1 // pred_check_branch
      %44 = sbr.rel (0) target = $region29
    $region28: #{tpu_custom_call.1} parent=1 // pred_region
      _
    $region29: #{tpu_custom_call.1} parent=1 // pred_fallthru
      _
    // Predicated region
    $region30: #{tpu_custom_call.1} parent=1 // pred_check
      _
    $region31: #{tpu_custom_call.1} parent=1 // pred_check_branch
      %46 = sbr.rel (0) target = $region33
    $region32: #{tpu_custom_call.1} parent=1 // pred_region
      _
    $region33: #{tpu_custom_call.1} parent=1 // pred_fallthru
      _
    // Predicated region
    $region34: #{tpu_custom_call.1} parent=1 // pred_check
      _
    $region35: #{tpu_custom_call.1} parent=1 // pred_check_branch
      %48 = sbr.rel (0) target = $region37
    $region36: #{tpu_custom_call.1} parent=1 // pred_region
      _
    $region37: #{tpu_custom_call.1} parent=1 // pred_fallthru
      _
    // Predicated region
    $region38: #{tpu_custom_call.1} parent=1 // pred_check
      _
    $region39: #{tpu_custom_call.1} parent=1 // pred_check_branch
      %50 = sbr.rel (0) target = $region41
    $region40: #{tpu_custom_call.1} parent=1 // pred_region
      _
    $region41: #{tpu_custom_call.1} parent=1 // pred_fallthru
      _
    // Predicated region
    $region42: #{tpu_custom_call.1} parent=1 // pred_check
      _
    $region43: #{tpu_custom_call.1} parent=1 // pred_check_branch
      %52 = sbr.rel (0) target = $region45
    $region44: #{tpu_custom_call.1} parent=1 // pred_region
      %54 = dma.done [#allocation5], 6144
    $region45: #{tpu_custom_call.1} parent=1 // pred_fallthru
      _
    %v55 = vld [vmem:[%s0] sm:$0xff]
    %v56 = vld [vmem:[%s0 + $0x8] sm:$0xff]
    %v57 = vld [vmem:[%s0 + $0x10] sm:$0xff]
    %v58 = vld [vmem:[%s0 + $0x18] sm:$0xff]
    %v59 = vld [vmem:[%s0 + $0x20] sm:$0xff]
    %v60 = vld [vmem:[%s0 + $0x28] sm:$0xff]
    %v61 = vld [vmem:[%s0 + $0x30] sm:$0xff]
    %v62 = vld [vmem:[%s0 + $0x38] sm:$0xff]
    %v63 = vld [vmem:[%s1] sm:$0xff]
    %v64 = vld [vmem:[%s1 + $0x8] sm:$0xff]
    %v65 = vld [vmem:[%s1 + $0x10] sm:$0xff]
    %v66 = vld [vmem:[%s2] sm:$0x7]
    %v68 = vperm.slane %v66, 0
    %v69 = vperm.slane %v66, 1
    %v70 = vperm.slane %v66, 2
    %vm74 = vcmask 64512
    %v76 = vsel %vm74, %v55, 0
    %v79 = vsel %vm74, %v56, 0
    %v82 = vsel %vm74, %v57, 0
    %v85 = vsel %vm74, %v58, 0
    %v88 = vsel %vm74, %v59, 0
    %v91 = vsel %vm74, %v60, 0
    %v94 = vsel %vm74, %v61, 0
    %v97 = vsel %vm74, %v62, 0
    %99 = vmatpush.msra.mxu0 0.0
    %100 = vmatpush.msra.mxu0 0.0
    %101 = vmatpush.msra.mxu0 0.0
    %102 = vmatpush.msra.mxu0 0.0
    %103 = vmatpush.msra.mxu0 0.0
    %104 = vmatpush.msra.mxu0 0.0
    %105 = vmatpush.msra.mxu0 0.0
    %106 = vmatpush.msra.mxu0 0.0
    %107 = vmatpush.msra.mxu0 0.0
    %108 = vmatpush.msra.mxu0 0.0
    %109 = vmatpush.msra.mxu0 0.0
    %110 = vmatpush.msra.mxu0 0.0
    %111 = vmatpush.msra.mxu0 0.0
    %112 = vmatpush.msra.mxu0 0.0
    %113 = vmatpush.msra.mxu0 0.0
    %114 = vmatpush.msra.mxu0 %v63
    %115 = vmatmul.f32.gmra.mxu0 %v76
    %v116 = vpop.f32.mrf.mxu0
    %v117 = vadd.f32 %v68, %v116
    %118 = vmatmul.f32.gmra.mxu0 %v79
    %v119 = vpop.f32.mrf.mxu0
    %v120 = vadd.f32 %v68, %v119
    %121 = vmatmul.f32.gmra.mxu0 %v82
    %v122 = vpop.f32.mrf.mxu0
    %v123 = vadd.f32 %v68, %v122
    %124 = vmatmul.f32.gmra.mxu0 %v85
    %v125 = vpop.f32.mrf.mxu0
    %v126 = vadd.f32 %v68, %v125
    %127 = vmatmul.f32.gmra.mxu0 %v88
    %v128 = vpop.f32.mrf.mxu0
    %v129 = vadd.f32 %v68, %v128
    %130 = vmatmul.f32.gmra.mxu0 %v91
    %v131 = vpop.f32.mrf.mxu0
    %v132 = vadd.f32 %v68, %v131
    %133 = vmatmul.f32.gmra.mxu0 %v94
    %v134 = vpop.f32.mrf.mxu0
    %v135 = vadd.f32 %v68, %v134
    %136 = vmatmul.f32.gmra.mxu0 %v97
    %v137 = vpop.f32.mrf.mxu0
    %v138 = vadd.f32 %v68, %v137
    %139 = vdwg.mxu0
    %140 = vmatpush.msra.mxu0 0.0
    %141 = vmatpush.msra.mxu0 0.0
    %142 = vmatpush.msra.mxu0 0.0
    %143 = vmatpush.msra.mxu0 0.0
    %144 = vmatpush.msra.mxu0 0.0
    %145 = vmatpush.msra.mxu0 0.0
    %146 = vmatpush.msra.mxu0 0.0
    %147 = vmatpush.msra.mxu0 0.0
    %148 = vmatpush.msra.mxu0 0.0
    %149 = vmatpush.msra.mxu0 0.0
    %150 = vmatpush.msra.mxu0 0.0
    %151 = vmatpush.msra.mxu0 0.0
    %152 = vmatpush.msra.mxu0 0.0
    %153 = vmatpush.msra.mxu0 0.0
    %154 = vmatpush.msra.mxu0 0.0
    %155 = vmatpush.msra.mxu0 %v64
    %156 = vmatmul.f32.gmra.mxu0 %v76
    %v157 = vpop.f32.mrf.mxu0
    %v158 = vadd.f32 %v69, %v157
    %159 = vmatmul.f32.gmra.mxu0 %v79
    %v160 = vpop.f32.mrf.mxu0
    %v161 = vadd.f32 %v69, %v160
    %162 = vmatmul.f32.gmra.mxu0 %v82
    %v163 = vpop.f32.mrf.mxu0
    %v164 = vadd.f32 %v69, %v163
    %165 = vmatmul.f32.gmra.mxu0 %v85
    %v166 = vpop.f32.mrf.mxu0
    %v167 = vadd.f32 %v69, %v166
    %168 = vmatmul.f32.gmra.mxu0 %v88
    %v169 = vpop.f32.mrf.mxu0
    %v170 = vadd.f32 %v69, %v169
    %171 = vmatmul.f32.gmra.mxu0 %v91
    %v172 = vpop.f32.mrf.mxu0
    %v173 = vadd.f32 %v69, %v172
    %174 = vmatmul.f32.gmra.mxu0 %v94
    %v175 = vpop.f32.mrf.mxu0
    %v176 = vadd.f32 %v69, %v175
    %177 = vmatmul.f32.gmra.mxu0 %v97
    %v178 = vpop.f32.mrf.mxu0
    %v179 = vadd.f32 %v69, %v178
    %180 = vdwg.mxu0
    %181 = vmatpush.msra.mxu0 0.0
    %182 = vmatpush.msra.mxu0 0.0
    %183 = vmatpush.msra.mxu0 0.0
    %184 = vmatpush.msra.mxu0 0.0
    %185 = vmatpush.msra.mxu0 0.0
    %186 = vmatpush.msra.mxu0 0.0
    %187 = vmatpush.msra.mxu0 0.0
    %188 = vmatpush.msra.mxu0 0.0
    %189 = vmatpush.msra.mxu0 0.0
    %190 = vmatpush.msra.mxu0 0.0
    %191 = vmatpush.msra.mxu0 0.0
    %192 = vmatpush.msra.mxu0 0.0
    %193 = vmatpush.msra.mxu0 0.0
    %194 = vmatpush.msra.mxu0 0.0
    %195 = vmatpush.msra.mxu0 0.0
    %196 = vmatpush.msra.mxu0 %v65
    %197 = vmatmul.f32.gmra.mxu0 %v76
    %v198 = vpop.f32.mrf.mxu0
    %v199 = vadd.f32 %v70, %v198
    %200 = vmatmul.f32.gmra.mxu0 %v79
    %v201 = vpop.f32.mrf.mxu0
    %v202 = vadd.f32 %v70, %v201
    %203 = vmatmul.f32.gmra.mxu0 %v82
    %v204 = vpop.f32.mrf.mxu0
    %v205 = vadd.f32 %v70, %v204
    %206 = vmatmul.f32.gmra.mxu0 %v85
    %v207 = vpop.f32.mrf.mxu0
    %v208 = vadd.f32 %v70, %v207
    %209 = vmatmul.f32.gmra.mxu0 %v88
    %v210 = vpop.f32.mrf.mxu0
    %v211 = vadd.f32 %v70, %v210
    %212 = vmatmul.f32.gmra.mxu0 %v91
    %v213 = vpop.f32.mrf.mxu0
    %v214 = vadd.f32 %v70, %v213
    %215 = vmatmul.f32.gmra.mxu0 %v94
    %v216 = vpop.f32.mrf.mxu0
    %v217 = vadd.f32 %v70, %v216
    %218 = vmatmul.f32.gmra.mxu0 %v97
    %v219 = vpop.f32.mrf.mxu0
    %v220 = vadd.f32 %v70, %v219
    %221 = vdwg.mxu0
    %222 = vst [vmem:[#allocation2] sm:$0xff] %v117
    %223 = vst [vmem:[#allocation2 + $0x8] sm:$0xff] %v158
    %224 = vst [vmem:[#allocation2 + $0x10] sm:$0xff] %v199
    %225 = vst [vmem:[#allocation2 + $0x18] sm:$0xff] %v120
    %226 = vst [vmem:[#allocation2 + $0x20] sm:$0xff] %v161
    %227 = vst [vmem:[#allocation2 + $0x28] sm:$0xff] %v202
    %228 = vst [vmem:[#allocation2 + $0x30] sm:$0xff] %v123
    %229 = vst [vmem:[#allocation2 + $0x38] sm:$0xff] %v164
    %230 = vst [vmem:[#allocation2 + $0x40] sm:$0xff] %v205
    %231 = vst [vmem:[#allocation2 + $0x48] sm:$0xff] %v126
    %232 = vst [vmem:[#allocation2 + $0x50] sm:$0xff] %v167
    %233 = vst [vmem:[#allocation2 + $0x58] sm:$0xff] %v208
    %234 = vst [vmem:[#allocation2 + $0x60] sm:$0xff] %v129
    %235 = vst [vmem:[#allocation2 + $0x68] sm:$0xff] %v170
    %236 = vst [vmem:[#allocation2 + $0x70] sm:$0xff] %v211
    %237 = vst [vmem:[#allocation2 + $0x78] sm:$0xff] %v132
    %238 = vst [vmem:[#allocation2 + $0x80] sm:$0xff] %v173
    %239 = vst [vmem:[#allocation2 + $0x88] sm:$0xff] %v214
    %240 = vst [vmem:[#allocation2 + $0x90] sm:$0xff] %v135
    %241 = vst [vmem:[#allocation2 + $0x98] sm:$0xff] %v176
    %242 = vst [vmem:[#allocation2 + $0xa0] sm:$0xff] %v217
    %243 = vst [vmem:[#allocation2 + $0xa8] sm:$0xff] %v138
    %244 = vst [vmem:[#allocation2 + $0xb0] sm:$0xff] %v179
    %245 = vst [vmem:[#allocation2 + $0xb8] sm:$0xff] %v220
    %v246 = vld [vmem:[#allocation4] sm:$0xff]
    %v247 = vld [vmem:[#allocation4 + $0x8] sm:$0xff]
    %v248 = vld [vmem:[#allocation4 + $0x10] sm:$0xff]
    %v249 = vld [vmem:[#allocation4 + $0x18] sm:$0xff]
    %v250 = vld [vmem:[#allocation4 + $0x20] sm:$0xff]
    %v251 = vld [vmem:[#allocation4 + $0x28] sm:$0xff]
    %v252 = vld [vmem:[#allocation4 + $0x30] sm:$0xff]
    %v253 = vld [vmem:[#allocation4 + $0x38] sm:$0xff]
    %v254 = vld [vmem:[#allocation4 + $0x40] sm:$0xff]
    %v255 = vld [vmem:[#allocation4 + $0x48] sm:$0xff]
    %v256 = vld [vmem:[#allocation4 + $0x50] sm:$0xff]
    %v257 = vld [vmem:[#allocation4 + $0x58] sm:$0xff]
    %v258 = vld [vmem:[#allocation4 + $0x60] sm:$0xff]
    %v259 = vld [vmem:[#allocation4 + $0x68] sm:$0xff]
    %v260 = vld [vmem:[#allocation4 + $0x70] sm:$0xff]
    %v261 = vld [vmem:[#allocation4 + $0x78] sm:$0xff]
    %v262 = vld [vmem:[#allocation4 + $0x80] sm:$0xff]
    %v263 = vld [vmem:[#allocation4 + $0x88] sm:$0xff]
    %v264 = vld [vmem:[#allocation4 + $0x90] sm:$0xff]
    %v265 = vld [vmem:[#allocation4 + $0x98] sm:$0xff]
    %v266 = vld [vmem:[#allocation4 + $0xa0] sm:$0xff]
    %v267 = vld [vmem:[#allocation4 + $0xa8] sm:$0xff]
    %v268 = vld [vmem:[#allocation4 + $0xb0] sm:$0xff]
    %v269 = vld [vmem:[#allocation4 + $0xb8] sm:$0xff]
    %v270 = vld [vmem:[#allocation4 + $0xc0] sm:$0xff]
    %v271 = vld [vmem:[#allocation4 + $0xc8] sm:$0xff]
    %v272 = vld [vmem:[#allocation4 + $0xd0] sm:$0xff]
    %v273 = vld [vmem:[#allocation4 + $0xd8] sm:$0xff]
    %v274 = vld [vmem:[#allocation4 + $0xe0] sm:$0xff]
    %v275 = vld [vmem:[#allocation4 + $0xe8] sm:$0xff]
    %v276 = vld [vmem:[#allocation4 + $0xf0] sm:$0xff]
    %v277 = vld [vmem:[#allocation4 + $0xf8] sm:$0xff]
    %v278 = vld [vmem:[#allocation4 + $0x100] sm:$0xff]
    %v279 = vld [vmem:[#allocation4 + $0x108] sm:$0xff]
    %v280 = vld [vmem:[#allocation4 + $0x110] sm:$0xff]
    %v281 = vld [vmem:[#allocation4 + $0x118] sm:$0xff]
    %v282 = vld [vmem:[#allocation4 + $0x120] sm:$0xff]
    %v283 = vld [vmem:[#allocation4 + $0x128] sm:$0xff]
    %v284 = vld [vmem:[#allocation4 + $0x130] sm:$0xff]
    %v285 = vld [vmem:[#allocation4 + $0x138] sm:$0xff]
    %v286 = vld [vmem:[#allocation4 + $0x140] sm:$0xff]
    %v287 = vld [vmem:[#allocation4 + $0x148] sm:$0xff]
    %v288 = vld [vmem:[#allocation4 + $0x150] sm:$0xff]
    %v289 = vld [vmem:[#allocation4 + $0x158] sm:$0xff]
    %v290 = vld [vmem:[#allocation4 + $0x160] sm:$0xff]
    %v291 = vld [vmem:[#allocation4 + $0x168] sm:$0xff]
    %v292 = vld [vmem:[#allocation4 + $0x170] sm:$0xff]
    %v293 = vld [vmem:[#allocation4 + $0x178] sm:$0xff]
    %v294 = vld [vmem:[%s4] sm:$0x1]
    %v296 = vperm.slane %v294, 0
    %v298 = vld [vmem:[%s5] sm:$0xff]
    %v299 = vld [vmem:[#allocation2] sm:$0xff]
    %v300 = vld [vmem:[#allocation2 + $0x8] sm:$0xff]
    %v301 = vld [vmem:[#allocation2 + $0x10] sm:$0xff]
    %302 = vmatpush.msra.mxu0 %v291
    %303 = vmatpush.msra.mxu0 %v288
    %304 = vmatpush.msra.mxu0 %v285
    %305 = vmatpush.msra.mxu0 %v282
    %306 = vmatpush.msra.mxu0 %v279
    %307 = vmatpush.msra.mxu0 %v276
    %308 = vmatpush.msra.mxu0 %v273
    %309 = vmatpush.msra.mxu0 %v270
    %310 = vmatpush.msra.mxu0 %v267
    %311 = vmatpush.msra.mxu0 %v264
    %312 = vmatpush.msra.mxu0 %v261
    %313 = vmatpush.msra.mxu0 %v258
    %314 = vmatpush.msra.mxu0 %v255
    %315 = vmatpush.msra.mxu0 %v252
    %316 = vmatpush.msra.mxu0 %v249
    %317 = vmatpush.msra.mxu0 %v246
    %318 = vmatmul.f32.gmra.mxu0 %v298
    %v319 = vpop.f32.mrf.mxu0
    %v320 = vadd.f32 0.0, %v319
    %321 = vdwg.mxu0
    %322 = vmatpush.msra.mxu0 %v292
    %323 = vmatpush.msra.mxu0 %v289
    %324 = vmatpush.msra.mxu0 %v286
    %325 = vmatpush.msra.mxu0 %v283
    %326 = vmatpush.msra.mxu0 %v280
    %327 = vmatpush.msra.mxu0 %v277
    %328 = vmatpush.msra.mxu0 %v274
    %329 = vmatpush.msra.mxu0 %v271
    %330 = vmatpush.msra.mxu0 %v268
    %331 = vmatpush.msra.mxu0 %v265
    %332 = vmatpush.msra.mxu0 %v262
    %333 = vmatpush.msra.mxu0 %v259
    %334 = vmatpush.msra.mxu0 %v256
    %335 = vmatpush.msra.mxu0 %v253
    %336 = vmatpush.msra.mxu0 %v250
    %337 = vmatpush.msra.mxu0 %v247
    %338 = vmatmul.f32.gmra.mxu0 %v298
    %v339 = vpop.f32.mrf.mxu0
    %v340 = vadd.f32 0.0, %v339
    %341 = vdwg.mxu0
    %342 = vmatpush.msra.mxu0 %v293
    %343 = vmatpush.msra.mxu0 %v290
    %344 = vmatpush.msra.mxu0 %v287
    %345 = vmatpush.msra.mxu0 %v284
    %346 = vmatpush.msra.mxu0 %v281
    %347 = vmatpush.msra.mxu0 %v278
    %348 = vmatpush.msra.mxu0 %v275
    %349 = vmatpush.msra.mxu0 %v272
    %350 = vmatpush.msra.mxu0 %v269
    %351 = vmatpush.msra.mxu0 %v266
    %352 = vmatpush.msra.mxu0 %v263
    %353 = vmatpush.msra.mxu0 %v260
    %354 = vmatpush.msra.mxu0 %v257
    %355 = vmatpush.msra.mxu0 %v254
    %356 = vmatpush.msra.mxu0 %v251
    %357 = vmatpush.msra.mxu0 %v248
    %358 = vmatmul.f32.gmra.mxu0 %v298
    %v359 = vpop.f32.mrf.mxu0
    %v360 = vadd.f32 0.0, %v359
    %361 = vdwg.mxu0
    %v362 = vadd.f32 %v299, %v320
    %v363 = vadd.f32 %v300, %v340
    %v364 = vxor.u32 %v362, 2147483648
    %v365 = vxor.u32 %v363, 2147483648
    %v366 = vmul.f32 %v364, 1.442695
    %v367 = vpow.pop %v366
    %v368 = vmul.f32 %v365, 1.442695
    %v369 = vpow.pop %v368
    %v370 = vadd.f32 %v367, 1.0
    %v371 = vadd.f32 %v369, 1.0
    %v372 = vrcp.pop %v370
    %v373 = vmul.f32 %v370, %v372
    %v374 = vsub.f32 1.0, %v373
    %v375 = vmul.f32 %v372, %v374
    %v376 = vadd.f32 %v372, %v375
    %vm377 = vweird.f32 %v370
    %vm378 = vweird.f32 %v372
    %vm379 = vmor %vm377, %vm378
    %v380 = vsel %vm379, %v372, %v376
    %v381 = vand.u32 2147483647, %v370
    %vm382 = vcmp.eq.f32.partialorder %v381, 8.507059e+37
    %v383 = vand.u32 %v370, 2147483648
    %v384 = vor.u32 1.1754944e-38, %v383
    %v385 = vsel %vm382, %v384, %v380
    %v386 = vmul.f32 1.0, %v385
    %v387 = vrcp.pop %v371
    %v388 = vmul.f32 %v371, %v387
    %v389 = vsub.f32 1.0, %v388
    %v390 = vmul.f32 %v387, %v389
    %v391 = vadd.f32 %v387, %v390
    %vm392 = vweird.f32 %v371
    %vm393 = vweird.f32 %v387
    %vm394 = vmor %vm392, %vm393
    %v395 = vsel %vm394, %v387, %v391
    %v396 = vand.u32 2147483647, %v371
    %vm397 = vcmp.eq.f32.partialorder %v396, 8.507059e+37
    %v398 = vand.u32 %v371, 2147483648
    %v399 = vor.u32 1.1754944e-38, %v398
    %v400 = vsel %vm397, %v399, %v395
    %v401 = vmul.f32 1.0, %v400
    %v402 = vadd.f32 %v360, %v296
    %v403 = vmul.f32 %v386, %v402
    %v404 = vadd.f32 %v301, %v403
    %v405 = vtanh.pop %v404
    %v406 = vsub.f32 %v298, %v405
    %v407 = vmul.f32 %v401, %v406
    %v408 = vadd.f32 %v405, %v407
    %409 = vst [vmem:[#allocation3] sm:$0xff] %v408
    %s410 = scalar_lea.vmem [#allocation2], 24
    %v411 = vld [vmem:[%s410] sm:$0xff]
    %v412 = vld [vmem:[%s410 + $0x8] sm:$0xff]
    %v413 = vld [vmem:[%s410 + $0x10] sm:$0xff]
    %414 = vmatpush.msra.mxu0 %v291
    %415 = vmatpush.msra.mxu0 %v288
    %416 = vmatpush.msra.mxu0 %v285
    %417 = vmatpush.msra.mxu0 %v282
    %418 = vmatpush.msra.mxu0 %v279
    %419 = vmatpush.msra.mxu0 %v276
    %420 = vmatpush.msra.mxu0 %v273
    %421 = vmatpush.msra.mxu0 %v270
    %422 = vmatpush.msra.mxu0 %v267
    %423 = vmatpush.msra.mxu0 %v264
    %424 = vmatpush.msra.mxu0 %v261
    %425 = vmatpush.msra.mxu0 %v258
    %426 = vmatpush.msra.mxu0 %v255
    %427 = vmatpush.msra.mxu0 %v252
    %428 = vmatpush.msra.mxu0 %v249
    %429 = vmatpush.msra.mxu0 %v246
    %430 = vmatmul.f32.gmra.mxu0 %v408
    %v431 = vpop.f32.mrf.mxu0
    %v432 = vadd.f32 0.0, %v431
    %433 = vdwg.mxu0
    %434 = vmatpush.msra.mxu0 %v292
    %435 = vmatpush.msra.mxu0 %v289
    %436 = vmatpush.msra.mxu0 %v286
    %437 = vmatpush.msra.mxu0 %v283
    %438 = vmatpush.msra.mxu0 %v280
    %439 = vmatpush.msra.mxu0 %v277
    %440 = vmatpush.msra.mxu0 %v274
    %441 = vmatpush.msra.mxu0 %v271
    %442 = vmatpush.msra.mxu0 %v268
    %443 = vmatpush.msra.mxu0 %v265
    %444 = vmatpush.msra.mxu0 %v262
    %445 = vmatpush.msra.mxu0 %v259
    %446 = vmatpush.msra.mxu0 %v256
    %447 = vmatpush.msra.mxu0 %v253
    %448 = vmatpush.msra.mxu0 %v250
    %449 = vmatpush.msra.mxu0 %v247
    %450 = vmatmul.f32.gmra.mxu0 %v408
    %v451 = vpop.f32.mrf.mxu0
    %v452 = vadd.f32 0.0, %v451
    %453 = vdwg.mxu0
    %454 = vmatpush.msra.mxu0 %v293
    %455 = vmatpush.msra.mxu0 %v290
    %456 = vmatpush.msra.mxu0 %v287
    %457 = vmatpush.msra.mxu0 %v284
    %458 = vmatpush.msra.mxu0 %v281
    %459 = vmatpush.msra.mxu0 %v278
    %460 = vmatpush.msra.mxu0 %v275
    %461 = vmatpush.msra.mxu0 %v272
    %462 = vmatpush.msra.mxu0 %v269
    %463 = vmatpush.msra.mxu0 %v266
    %464 = vmatpush.msra.mxu0 %v263
    %465 = vmatpush.msra.mxu0 %v260
    %466 = vmatpush.msra.mxu0 %v257
    %467 = vmatpush.msra.mxu0 %v254
    %468 = vmatpush.msra.mxu0 %v251
    %469 = vmatpush.msra.mxu0 %v248
    %470 = vmatmul.f32.gmra.mxu0 %v408
    %v471 = vpop.f32.mrf.mxu0
    %v472 = vadd.f32 0.0, %v471
    %473 = vdwg.mxu0
    %v474 = vadd.f32 %v411, %v432
    %v475 = vadd.f32 %v412, %v452
    %v476 = vxor.u32 %v474, 2147483648
    %v477 = vxor.u32 %v475, 2147483648
    %v478 = vmul.f32 %v476, 1.442695
    %v479 = vpow.pop %v478
    %v480 = vmul.f32 %v477, 1.442695
    %v481 = vpow.pop %v480
    %v482 = vadd.f32 %v479, 1.0
    %v483 = vadd.f32 %v481, 1.0
    %v484 = vrcp.pop %v482
    %v485 = vmul.f32 %v482, %v484
    %v486 = vsub.f32 1.0, %v485
    %v487 = vmul.f32 %v484, %v486
    %v488 = vadd.f32 %v484, %v487
    %vm489 = vweird.f32 %v482
    %vm490 = vweird.f32 %v484
    %vm491 = vmor %vm489, %vm490
    %v492 = vsel %vm491, %v484, %v488
    %v493 = vand.u32 2147483647, %v482
    %vm494 = vcmp.eq.f32.partialorder %v493, 8.507059e+37
    %v495 = vand.u32 %v482, 2147483648
    %v496 = vor.u32 1.1754944e-38, %v495
    %v497 = vsel %vm494, %v496, %v492
    %v498 = vmul.f32 1.0, %v497
    %v499 = vrcp.pop %v483
    %v500 = vmul.f32 %v483, %v499
    %v501 = vsub.f32 1.0, %v500
    %v502 = vmul.f32 %v499, %v501
    %v503 = vadd.f32 %v499, %v502
    %vm504 = vweird.f32 %v483
    %vm505 = vweird.f32 %v499
    %vm506 = vmor %vm504, %vm505
    %v507 = vsel %vm506, %v499, %v503
    %v508 = vand.u32 2147483647, %v483
    %vm509 = vcmp.eq.f32.partialorder %v508, 8.507059e+37
    %v510 = vand.u32 %v483, 2147483648
    %v511 = vor.u32 1.1754944e-38, %v510
    %v512 = vsel %vm509, %v511, %v507
    %v513 = vmul.f32 1.0, %v512
    %v514 = vadd.f32 %v472, %v296
    %v515 = vmul.f32 %v498, %v514
    %v516 = vadd.f32 %v413, %v515
    %v517 = vtanh.pop %v516
    %v518 = vsub.f32 %v408, %v517
    %v519 = vmul.f32 %v513, %v518
    %v520 = vadd.f32 %v517, %v519
    %s521 = scalar_lea.vmem [#allocation3], 8
    %522 = vst [vmem:[%s521] sm:$0xff] %v520
    %s523 = scalar_lea.vmem [#allocation2], 48
    %v524 = vld [vmem:[%s523] sm:$0xff]
    %v525 = vld [vmem:[%s523 + $0x8] sm:$0xff]
    %v526 = vld [vmem:[%s523 + $0x10] sm:$0xff]
    %527 = vmatpush.msra.mxu0 %v291
    %528 = vmatpush.msra.mxu0 %v288
    %529 = vmatpush.msra.mxu0 %v285
    %530 = vmatpush.msra.mxu0 %v282
    %531 = vmatpush.msra.mxu0 %v279
    %532 = vmatpush.msra.mxu0 %v276
    %533 = vmatpush.msra.mxu0 %v273
    %534 = vmatpush.msra.mxu0 %v270
    %535 = vmatpush.msra.mxu0 %v267
    %536 = vmatpush.msra.mxu0 %v264
    %537 = vmatpush.msra.mxu0 %v261
    %538 = vmatpush.msra.mxu0 %v258
    %539 = vmatpush.msra.mxu0 %v255
    %540 = vmatpush.msra.mxu0 %v252
    %541 = vmatpush.msra.mxu0 %v249
    %542 = vmatpush.msra.mxu0 %v246
    %543 = vmatmul.f32.gmra.mxu0 %v520
    %v544 = vpop.f32.mrf.mxu0
    %v545 = vadd.f32 0.0, %v544
    %546 = vdwg.mxu0
    %547 = vmatpush.msra.mxu0 %v292
    %548 = vmatpush.msra.mxu0 %v289
    %549 = vmatpush.msra.mxu0 %v286
    %550 = vmatpush.msra.mxu0 %v283
    %551 = vmatpush.msra.mxu0 %v280
    %552 = vmatpush.msra.mxu0 %v277
    %553 = vmatpush.msra.mxu0 %v274
    %554 = vmatpush.msra.mxu0 %v271
    %555 = vmatpush.msra.mxu0 %v268
    %556 = vmatpush.msra.mxu0 %v265
    %557 = vmatpush.msra.mxu0 %v262
    %558 = vmatpush.msra.mxu0 %v259
    %559 = vmatpush.msra.mxu0 %v256
    %560 = vmatpush.msra.mxu0 %v253
    %561 = vmatpush.msra.mxu0 %v250
    %562 = vmatpush.msra.mxu0 %v247
    %563 = vmatmul.f32.gmra.mxu0 %v520
    %v564 = vpop.f32.mrf.mxu0
    %v565 = vadd.f32 0.0, %v564
    %566 = vdwg.mxu0
    %567 = vmatpush.msra.mxu0 %v293
    %568 = vmatpush.msra.mxu0 %v290
    %569 = vmatpush.msra.mxu0 %v287
    %570 = vmatpush.msra.mxu0 %v284
    %571 = vmatpush.msra.mxu0 %v281
    %572 = vmatpush.msra.mxu0 %v278
    %573 = vmatpush.msra.mxu0 %v275
    %574 = vmatpush.msra.mxu0 %v272
    %575 = vmatpush.msra.mxu0 %v269
    %576 = vmatpush.msra.mxu0 %v266
    %577 = vmatpush.msra.mxu0 %v263
    %578 = vmatpush.msra.mxu0 %v260
    %579 = vmatpush.msra.mxu0 %v257
    %580 = vmatpush.msra.mxu0 %v254
    %581 = vmatpush.msra.mxu0 %v251
    %582 = vmatpush.msra.mxu0 %v248
    %583 = vmatmul.f32.gmra.mxu0 %v520
    %v584 = vpop.f32.mrf.mxu0
    %v585 = vadd.f32 0.0, %v584
    %586 = vdwg.mxu0
    %v587 = vadd.f32 %v524, %v545
    %v588 = vadd.f32 %v525, %v565
    %v589 = vxor.u32 %v587, 2147483648
    %v590 = vxor.u32 %v588, 2147483648
    %v591 = vmul.f32 %v589, 1.442695
    %v592 = vpow.pop %v591
    %v593 = vmul.f32 %v590, 1.442695
    %v594 = vpow.pop %v593
    %v595 = vadd.f32 %v592, 1.0
    %v596 = vadd.f32 %v594, 1.0
    %v597 = vrcp.pop %v595
    %v598 = vmul.f32 %v595, %v597
    %v599 = vsub.f32 1.0, %v598
    %v600 = vmul.f32 %v597, %v599
    %v601 = vadd.f32 %v597, %v600
    %vm602 = vweird.f32 %v595
    %vm603 = vweird.f32 %v597
    %vm604 = vmor %vm602, %vm603
    %v605 = vsel %vm604, %v597, %v601
    %v606 = vand.u32 2147483647, %v595
    %vm607 = vcmp.eq.f32.partialorder %v606, 8.507059e+37
    %v608 = vand.u32 %v595, 2147483648
    %v609 = vor.u32 1.1754944e-38, %v608
    %v610 = vsel %vm607, %v609, %v605
    %v611 = vmul.f32 1.0, %v610
    %v612 = vrcp.pop %v596
    %v613 = vmul.f32 %v596, %v612
    %v614 = vsub.f32 1.0, %v613
    %v615 = vmul.f32 %v612, %v614
    %v616 = vadd.f32 %v612, %v615
    %vm617 = vweird.f32 %v596
    %vm618 = vweird.f32 %v612
    %vm619 = vmor %vm617, %vm618
    %v620 = vsel %vm619, %v612, %v616
    %v621 = vand.u32 2147483647, %v596
    %vm622 = vcmp.eq.f32.partialorder %v621, 8.507059e+37
    %v623 = vand.u32 %v596, 2147483648
    %v624 = vor.u32 1.1754944e-38, %v623
    %v625 = vsel %vm622, %v624, %v620
    %v626 = vmul.f32 1.0, %v625
    %v627 = vadd.f32 %v585, %v296
    %v628 = vmul.f32 %v611, %v627
    %v629 = vadd.f32 %v526, %v628
    %v630 = vtanh.pop %v629
    %v631 = vsub.f32 %v520, %v630
    %v632 = vmul.f32 %v626, %v631
    %v633 = vadd.f32 %v630, %v632
    %s634 = scalar_lea.vmem [#allocation3], 16
    %635 = vst [vmem:[%s634] sm:$0xff] %v633
    %s636 = scalar_lea.vmem [#allocation2], 72
    %v637 = vld [vmem:[%s636] sm:$0xff]
    %v638 = vld [vmem:[%s636 + $0x8] sm:$0xff]
    %v639 = vld [vmem:[%s636 + $0x10] sm:$0xff]
    %640 = vmatpush.msra.mxu0 %v291
    %641 = vmatpush.msra.mxu0 %v288
    %642 = vmatpush.msra.mxu0 %v285
    %643 = vmatpush.msra.mxu0 %v282
    %644 = vmatpush.msra.mxu0 %v279
    %645 = vmatpush.msra.mxu0 %v276
    %646 = vmatpush.msra.mxu0 %v273
    %647 = vmatpush.msra.mxu0 %v270
    %648 = vmatpush.msra.mxu0 %v267
    %649 = vmatpush.msra.mxu0 %v264
    %650 = vmatpush.msra.mxu0 %v261
    %651 = vmatpush.msra.mxu0 %v258
    %652 = vmatpush.msra.mxu0 %v255
    %653 = vmatpush.msra.mxu0 %v252
    %654 = vmatpush.msra.mxu0 %v249
    %655 = vmatpush.msra.mxu0 %v246
    %656 = vmatmul.f32.gmra.mxu0 %v633
    %v657 = vpop.f32.mrf.mxu0
    %v658 = vadd.f32 0.0, %v657
    %659 = vdwg.mxu0
    %660 = vmatpush.msra.mxu0 %v292
    %661 = vmatpush.msra.mxu0 %v289
    %662 = vmatpush.msra.mxu0 %v286
    %663 = vmatpush.msra.mxu0 %v283
    %664 = vmatpush.msra.mxu0 %v280
    %665 = vmatpush.msra.mxu0 %v277
    %666 = vmatpush.msra.mxu0 %v274
    %667 = vmatpush.msra.mxu0 %v271
    %668 = vmatpush.msra.mxu0 %v268
    %669 = vmatpush.msra.mxu0 %v265
    %670 = vmatpush.msra.mxu0 %v262
    %671 = vmatpush.msra.mxu0 %v259
    %672 = vmatpush.msra.mxu0 %v256
    %673 = vmatpush.msra.mxu0 %v253
    %674 = vmatpush.msra.mxu0 %v250
    %675 = vmatpush.msra.mxu0 %v247
    %676 = vmatmul.f32.gmra.mxu0 %v633
    %v677 = vpop.f32.mrf.mxu0
    %v678 = vadd.f32 0.0, %v677
    %679 = vdwg.mxu0
    %680 = vmatpush.msra.mxu0 %v293
    %681 = vmatpush.msra.mxu0 %v290
    %682 = vmatpush.msra.mxu0 %v287
    %683 = vmatpush.msra.mxu0 %v284
    %684 = vmatpush.msra.mxu0 %v281
    %685 = vmatpush.msra.mxu0 %v278
    %686 = vmatpush.msra.mxu0 %v275
    %687 = vmatpush.msra.mxu0 %v272
    %688 = vmatpush.msra.mxu0 %v269
    %689 = vmatpush.msra.mxu0 %v266
    %690 = vmatpush.msra.mxu0 %v263
    %691 = vmatpush.msra.mxu0 %v260
    %692 = vmatpush.msra.mxu0 %v257
    %693 = vmatpush.msra.mxu0 %v254
    %694 = vmatpush.msra.mxu0 %v251
    %695 = vmatpush.msra.mxu0 %v248
    %696 = vmatmul.f32.gmra.mxu0 %v633
    %v697 = vpop.f32.mrf.mxu0
    %v698 = vadd.f32 0.0, %v697
    %699 = vdwg.mxu0
    %v700 = vadd.f32 %v637, %v658
    %v701 = vadd.f32 %v638, %v678
    %v702 = vxor.u32 %v700, 2147483648
    %v703 = vxor.u32 %v701, 2147483648
    %v704 = vmul.f32 %v702, 1.442695
    %v705 = vpow.pop %v704
    %v706 = vmul.f32 %v703, 1.442695
    %v707 = vpow.pop %v706
    %v708 = vadd.f32 %v705, 1.0
    %v709 = vadd.f32 %v707, 1.0
    %v710 = vrcp.pop %v708
    %v711 = vmul.f32 %v708, %v710
    %v712 = vsub.f32 1.0, %v711
    %v713 = vmul.f32 %v710, %v712
    %v714 = vadd.f32 %v710, %v713
    %vm715 = vweird.f32 %v708
    %vm716 = vweird.f32 %v710
    %vm717 = vmor %vm715, %vm716
    %v718 = vsel %vm717, %v710, %v714
    %v719 = vand.u32 2147483647, %v708
    %vm720 = vcmp.eq.f32.partialorder %v719, 8.507059e+37
    %v721 = vand.u32 %v708, 2147483648
    %v722 = vor.u32 1.1754944e-38, %v721
    %v723 = vsel %vm720, %v722, %v718
    %v724 = vmul.f32 1.0, %v723
    %v725 = vrcp.pop %v709
    %v726 = vmul.f32 %v709, %v725
    %v727 = vsub.f32 1.0, %v726
    %v728 = vmul.f32 %v725, %v727
    %v729 = vadd.f32 %v725, %v728
    %vm730 = vweird.f32 %v709
    %vm731 = vweird.f32 %v725
    %vm732 = vmor %vm730, %vm731
    %v733 = vsel %vm732, %v725, %v729
    %v734 = vand.u32 2147483647, %v709
    %vm735 = vcmp.eq.f32.partialorder %v734, 8.507059e+37
    %v736 = vand.u32 %v709, 2147483648
    %v737 = vor.u32 1.1754944e-38, %v736
    %v738 = vsel %vm735, %v737, %v733
    %v739 = vmul.f32 1.0, %v738
    %v740 = vadd.f32 %v698, %v296
    %v741 = vmul.f32 %v724, %v740
    %v742 = vadd.f32 %v639, %v741
    %v743 = vtanh.pop %v742
    %v744 = vsub.f32 %v633, %v743
    %v745 = vmul.f32 %v739, %v744
    %v746 = vadd.f32 %v743, %v745
    %s747 = scalar_lea.vmem [#allocation3], 24
    %748 = vst [vmem:[%s747] sm:$0xff] %v746
    %s749 = scalar_lea.vmem [#allocation2], 96
    %v750 = vld [vmem:[%s749] sm:$0xff]
    %v751 = vld [vmem:[%s749 + $0x8] sm:$0xff]
    %v752 = vld [vmem:[%s749 + $0x10] sm:$0xff]
    %753 = vmatpush.msra.mxu0 %v291
    %754 = vmatpush.msra.mxu0 %v288
    %755 = vmatpush.msra.mxu0 %v285
    %756 = vmatpush.msra.mxu0 %v282
    %757 = vmatpush.msra.mxu0 %v279
    %758 = vmatpush.msra.mxu0 %v276
    %759 = vmatpush.msra.mxu0 %v273
    %760 = vmatpush.msra.mxu0 %v270
    %761 = vmatpush.msra.mxu0 %v267
    %762 = vmatpush.msra.mxu0 %v264
    %763 = vmatpush.msra.mxu0 %v261
    %764 = vmatpush.msra.mxu0 %v258
    %765 = vmatpush.msra.mxu0 %v255
    %766 = vmatpush.msra.mxu0 %v252
    %767 = vmatpush.msra.mxu0 %v249
    %768 = vmatpush.msra.mxu0 %v246
    %769 = vmatmul.f32.gmra.mxu0 %v746
    %v770 = vpop.f32.mrf.mxu0
    %v771 = vadd.f32 0.0, %v770
    %772 = vdwg.mxu0
    %773 = vmatpush.msra.mxu0 %v292
    %774 = vmatpush.msra.mxu0 %v289
    %775 = vmatpush.msra.mxu0 %v286
    %776 = vmatpush.msra.mxu0 %v283
    %777 = vmatpush.msra.mxu0 %v280
    %778 = vmatpush.msra.mxu0 %v277
    %779 = vmatpush.msra.mxu0 %v274
    %780 = vmatpush.msra.mxu0 %v271
    %781 = vmatpush.msra.mxu0 %v268
    %782 = vmatpush.msra.mxu0 %v265
    %783 = vmatpush.msra.mxu0 %v262
    %784 = vmatpush.msra.mxu0 %v259
    %785 = vmatpush.msra.mxu0 %v256
    %786 = vmatpush.msra.mxu0 %v253
    %787 = vmatpush.msra.mxu0 %v250
    %788 = vmatpush.msra.mxu0 %v247
    %789 = vmatmul.f32.gmra.mxu0 %v746
    %v790 = vpop.f32.mrf.mxu0
    %v791 = vadd.f32 0.0, %v790
    %792 = vdwg.mxu0
    %793 = vmatpush.msra.mxu0 %v293
    %794 = vmatpush.msra.mxu0 %v290
    %795 = vmatpush.msra.mxu0 %v287
    %796 = vmatpush.msra.mxu0 %v284
    %797 = vmatpush.msra.mxu0 %v281
    %798 = vmatpush.msra.mxu0 %v278
    %799 = vmatpush.msra.mxu0 %v275
    %800 = vmatpush.msra.mxu0 %v272
    %801 = vmatpush.msra.mxu0 %v269
    %802 = vmatpush.msra.mxu0 %v266
    %803 = vmatpush.msra.mxu0 %v263
    %804 = vmatpush.msra.mxu0 %v260
    %805 = vmatpush.msra.mxu0 %v257
    %806 = vmatpush.msra.mxu0 %v254
    %807 = vmatpush.msra.mxu0 %v251
    %808 = vmatpush.msra.mxu0 %v248
    %809 = vmatmul.f32.gmra.mxu0 %v746
    %v810 = vpop.f32.mrf.mxu0
    %v811 = vadd.f32 0.0, %v810
    %812 = vdwg.mxu0
    %v813 = vadd.f32 %v750, %v771
    %v814 = vadd.f32 %v751, %v791
    %v815 = vxor.u32 %v813, 2147483648
    %v816 = vxor.u32 %v814, 2147483648
    %v817 = vmul.f32 %v815, 1.442695
    %v818 = vpow.pop %v817
    %v819 = vmul.f32 %v816, 1.442695
    %v820 = vpow.pop %v819
    %v821 = vadd.f32 %v818, 1.0
    %v822 = vadd.f32 %v820, 1.0
    %v823 = vrcp.pop %v821
    %v824 = vmul.f32 %v821, %v823
    %v825 = vsub.f32 1.0, %v824
    %v826 = vmul.f32 %v823, %v825
    %v827 = vadd.f32 %v823, %v826
    %vm828 = vweird.f32 %v821
    %vm829 = vweird.f32 %v823
    %vm830 = vmor %vm828, %vm829
    %v831 = vsel %vm830, %v823, %v827
    %v832 = vand.u32 2147483647, %v821
    %vm833 = vcmp.eq.f32.partialorder %v832, 8.507059e+37
    %v834 = vand.u32 %v821, 2147483648
    %v835 = vor.u32 1.1754944e-38, %v834
    %v836 = vsel %vm833, %v835, %v831
    %v837 = vmul.f32 1.0, %v836
    %v838 = vrcp.pop %v822
    %v839 = vmul.f32 %v822, %v838
    %v840 = vsub.f32 1.0, %v839
    %v841 = vmul.f32 %v838, %v840
    %v842 = vadd.f32 %v838, %v841
    %vm843 = vweird.f32 %v822
    %vm844 = vweird.f32 %v838
    %vm845 = vmor %vm843, %vm844
    %v846 = vsel %vm845, %v838, %v842
    %v847 = vand.u32 2147483647, %v822
    %vm848 = vcmp.eq.f32.partialorder %v847, 8.507059e+37
    %v849 = vand.u32 %v822, 2147483648
    %v850 = vor.u32 1.1754944e-38, %v849
    %v851 = vsel %vm848, %v850, %v846
    %v852 = vmul.f32 1.0, %v851
    %v853 = vadd.f32 %v811, %v296
    %v854 = vmul.f32 %v837, %v853
    %v855 = vadd.f32 %v752, %v854
    %v856 = vtanh.pop %v855
    %v857 = vsub.f32 %v746, %v856
    %v858 = vmul.f32 %v852, %v857
    %v859 = vadd.f32 %v856, %v858
    %s860 = scalar_lea.vmem [#allocation3], 32
    %861 = vst [vmem:[%s860] sm:$0xff] %v859
    %s862 = scalar_lea.vmem [#allocation2], 120
    %v863 = vld [vmem:[%s862] sm:$0xff]
    %v864 = vld [vmem:[%s862 + $0x8] sm:$0xff]
    %v865 = vld [vmem:[%s862 + $0x10] sm:$0xff]
    %866 = vmatpush.msra.mxu0 %v291
    %867 = vmatpush.msra.mxu0 %v288
    %868 = vmatpush.msra.mxu0 %v285
    %869 = vmatpush.msra.mxu0 %v282
    %870 = vmatpush.msra.mxu0 %v279
    %871 = vmatpush.msra.mxu0 %v276
    %872 = vmatpush.msra.mxu0 %v273
    %873 = vmatpush.msra.mxu0 %v270
    %874 = vmatpush.msra.mxu0 %v267
    %875 = vmatpush.msra.mxu0 %v264
    %876 = vmatpush.msra.mxu0 %v261
    %877 = vmatpush.msra.mxu0 %v258
    %878 = vmatpush.msra.mxu0 %v255
    %879 = vmatpush.msra.mxu0 %v252
    %880 = vmatpush.msra.mxu0 %v249
    %881 = vmatpush.msra.mxu0 %v246
    %882 = vmatmul.f32.gmra.mxu0 %v859
    %v883 = vpop.f32.mrf.mxu0
    %v884 = vadd.f32 0.0, %v883
    %885 = vdwg.mxu0
    %886 = vmatpush.msra.mxu0 %v292
    %887 = vmatpush.msra.mxu0 %v289
    %888 = vmatpush.msra.mxu0 %v286
    %889 = vmatpush.msra.mxu0 %v283
    %890 = vmatpush.msra.mxu0 %v280
    %891 = vmatpush.msra.mxu0 %v277
    %892 = vmatpush.msra.mxu0 %v274
    %893 = vmatpush.msra.mxu0 %v271
    %894 = vmatpush.msra.mxu0 %v268
    %895 = vmatpush.msra.mxu0 %v265
    %896 = vmatpush.msra.mxu0 %v262
    %897 = vmatpush.msra.mxu0 %v259
    %898 = vmatpush.msra.mxu0 %v256
    %899 = vmatpush.msra.mxu0 %v253
    %900 = vmatpush.msra.mxu0 %v250
    %901 = vmatpush.msra.mxu0 %v247
    %902 = vmatmul.f32.gmra.mxu0 %v859
    %v903 = vpop.f32.mrf.mxu0
    %v904 = vadd.f32 0.0, %v903
    %905 = vdwg.mxu0
    %906 = vmatpush.msra.mxu0 %v293
    %907 = vmatpush.msra.mxu0 %v290
    %908 = vmatpush.msra.mxu0 %v287
    %909 = vmatpush.msra.mxu0 %v284
    %910 = vmatpush.msra.mxu0 %v281
    %911 = vmatpush.msra.mxu0 %v278
    %912 = vmatpush.msra.mxu0 %v275
    %913 = vmatpush.msra.mxu0 %v272
    %914 = vmatpush.msra.mxu0 %v269
    %915 = vmatpush.msra.mxu0 %v266
    %916 = vmatpush.msra.mxu0 %v263
    %917 = vmatpush.msra.mxu0 %v260
    %918 = vmatpush.msra.mxu0 %v257
    %919 = vmatpush.msra.mxu0 %v254
    %920 = vmatpush.msra.mxu0 %v251
    %921 = vmatpush.msra.mxu0 %v248
    %922 = vmatmul.f32.gmra.mxu0 %v859
    %v923 = vpop.f32.mrf.mxu0
    %v924 = vadd.f32 0.0, %v923
    %925 = vdwg.mxu0
    %v926 = vadd.f32 %v863, %v884
    %v927 = vadd.f32 %v864, %v904
    %v928 = vxor.u32 %v926, 2147483648
    %v929 = vxor.u32 %v927, 2147483648
    %v930 = vmul.f32 %v928, 1.442695
    %v931 = vpow.pop %v930
    %v932 = vmul.f32 %v929, 1.442695
    %v933 = vpow.pop %v932
    %v934 = vadd.f32 %v931, 1.0
    %v935 = vadd.f32 %v933, 1.0
    %v936 = vrcp.pop %v934
    %v937 = vmul.f32 %v934, %v936
    %v938 = vsub.f32 1.0, %v937
    %v939 = vmul.f32 %v936, %v938
    %v940 = vadd.f32 %v936, %v939
    %vm941 = vweird.f32 %v934
    %vm942 = vweird.f32 %v936
    %vm943 = vmor %vm941, %vm942
    %v944 = vsel %vm943, %v936, %v940
    %v945 = vand.u32 2147483647, %v934
    %vm946 = vcmp.eq.f32.partialorder %v945, 8.507059e+37
    %v947 = vand.u32 %v934, 2147483648
    %v948 = vor.u32 1.1754944e-38, %v947
    %v949 = vsel %vm946, %v948, %v944
    %v950 = vmul.f32 1.0, %v949
    %v951 = vrcp.pop %v935
    %v952 = vmul.f32 %v935, %v951
    %v953 = vsub.f32 1.0, %v952
    %v954 = vmul.f32 %v951, %v953
    %v955 = vadd.f32 %v951, %v954
    %vm956 = vweird.f32 %v935
    %vm957 = vweird.f32 %v951
    %vm958 = vmor %vm956, %vm957
    %v959 = vsel %vm958, %v951, %v955
    %v960 = vand.u32 2147483647, %v935
    %vm961 = vcmp.eq.f32.partialorder %v960, 8.507059e+37
    %v962 = vand.u32 %v935, 2147483648
    %v963 = vor.u32 1.1754944e-38, %v962
    %v964 = vsel %vm961, %v963, %v959
    %v965 = vmul.f32 1.0, %v964
    %v966 = vadd.f32 %v924, %v296
    %v967 = vmul.f32 %v950, %v966
    %v968 = vadd.f32 %v865, %v967
    %v969 = vtanh.pop %v968
    %v970 = vsub.f32 %v859, %v969
    %v971 = vmul.f32 %v965, %v970
    %v972 = vadd.f32 %v969, %v971
    %s973 = scalar_lea.vmem [#allocation3], 40
    %974 = vst [vmem:[%s973] sm:$0xff] %v972
    %s975 = scalar_lea.vmem [#allocation2], 144
    %v976 = vld [vmem:[%s975] sm:$0xff]
    %v977 = vld [vmem:[%s975 + $0x8] sm:$0xff]
    %v978 = vld [vmem:[%s975 + $0x10] sm:$0xff]
    %979 = vmatpush.msra.mxu0 %v291
    %980 = vmatpush.msra.mxu0 %v288
    %981 = vmatpush.msra.mxu0 %v285
    %982 = vmatpush.msra.mxu0 %v282
    %983 = vmatpush.msra.mxu0 %v279
    %984 = vmatpush.msra.mxu0 %v276
    %985 = vmatpush.msra.mxu0 %v273
    %986 = vmatpush.msra.mxu0 %v270
    %987 = vmatpush.msra.mxu0 %v267
    %988 = vmatpush.msra.mxu0 %v264
    %989 = vmatpush.msra.mxu0 %v261
    %990 = vmatpush.msra.mxu0 %v258
    %991 = vmatpush.msra.mxu0 %v255
    %992 = vmatpush.msra.mxu0 %v252
    %993 = vmatpush.msra.mxu0 %v249
    %994 = vmatpush.msra.mxu0 %v246
    %995 = vmatmul.f32.gmra.mxu0 %v972
    %v996 = vpop.f32.mrf.mxu0
    %v997 = vadd.f32 0.0, %v996
    %998 = vdwg.mxu0
    %999 = vmatpush.msra.mxu0 %v292
    %1000 = vmatpush.msra.mxu0 %v289
    %1001 = vmatpush.msra.mxu0 %v286
    %1002 = vmatpush.msra.mxu0 %v283
    %1003 = vmatpush.msra.mxu0 %v280
    %1004 = vmatpush.msra.mxu0 %v277
    %1005 = vmatpush.msra.mxu0 %v274
    %1006 = vmatpush.msra.mxu0 %v271
    %1007 = vmatpush.msra.mxu0 %v268
    %1008 = vmatpush.msra.mxu0 %v265
    %1009 = vmatpush.msra.mxu0 %v262
    %1010 = vmatpush.msra.mxu0 %v259
    %1011 = vmatpush.msra.mxu0 %v256
    %1012 = vmatpush.msra.mxu0 %v253
    %1013 = vmatpush.msra.mxu0 %v250
    %1014 = vmatpush.msra.mxu0 %v247
    %1015 = vmatmul.f32.gmra.mxu0 %v972
    %v1016 = vpop.f32.mrf.mxu0
    %v1017 = vadd.f32 0.0, %v1016
    %1018 = vdwg.mxu0
    %1019 = vmatpush.msra.mxu0 %v293
    %1020 = vmatpush.msra.mxu0 %v290
    %1021 = vmatpush.msra.mxu0 %v287
    %1022 = vmatpush.msra.mxu0 %v284
    %1023 = vmatpush.msra.mxu0 %v281
    %1024 = vmatpush.msra.mxu0 %v278
    %1025 = vmatpush.msra.mxu0 %v275
    %1026 = vmatpush.msra.mxu0 %v272
    %1027 = vmatpush.msra.mxu0 %v269
    %1028 = vmatpush.msra.mxu0 %v266
    %1029 = vmatpush.msra.mxu0 %v263
    %1030 = vmatpush.msra.mxu0 %v260
    %1031 = vmatpush.msra.mxu0 %v257
    %1032 = vmatpush.msra.mxu0 %v254
    %1033 = vmatpush.msra.mxu0 %v251
    %1034 = vmatpush.msra.mxu0 %v248
    %1035 = vmatmul.f32.gmra.mxu0 %v972
    %v1036 = vpop.f32.mrf.mxu0
    %v1037 = vadd.f32 0.0, %v1036
    %1038 = vdwg.mxu0
    %v1039 = vadd.f32 %v976, %v997
    %v1040 = vadd.f32 %v977, %v1017
    %v1041 = vxor.u32 %v1039, 2147483648
    %v1042 = vxor.u32 %v1040, 2147483648
    %v1043 = vmul.f32 %v1041, 1.442695
    %v1044 = vpow.pop %v1043
    %v1045 = vmul.f32 %v1042, 1.442695
    %v1046 = vpow.pop %v1045
    %v1047 = vadd.f32 %v1044, 1.0
    %v1048 = vadd.f32 %v1046, 1.0
    %v1049 = vrcp.pop %v1047
    %v1050 = vmul.f32 %v1047, %v1049
    %v1051 = vsub.f32 1.0, %v1050
    %v1052 = vmul.f32 %v1049, %v1051
    %v1053 = vadd.f32 %v1049, %v1052
    %vm1054 = vweird.f32 %v1047
    %vm1055 = vweird.f32 %v1049
    %vm1056 = vmor %vm1054, %vm1055
    %v1057 = vsel %vm1056, %v1049, %v1053
    %v1058 = vand.u32 2147483647, %v1047
    %vm1059 = vcmp.eq.f32.partialorder %v1058, 8.507059e+37
    %v1060 = vand.u32 %v1047, 2147483648
    %v1061 = vor.u32 1.1754944e-38, %v1060
    %v1062 = vsel %vm1059, %v1061, %v1057
    %v1063 = vmul.f32 1.0, %v1062
    %v1064 = vrcp.pop %v1048
    %v1065 = vmul.f32 %v1048, %v1064
    %v1066 = vsub.f32 1.0, %v1065
    %v1067 = vmul.f32 %v1064, %v1066
    %v1068 = vadd.f32 %v1064, %v1067
    %vm1069 = vweird.f32 %v1048
    %vm1070 = vweird.f32 %v1064
    %vm1071 = vmor %vm1069, %vm1070
    %v1072 = vsel %vm1071, %v1064, %v1068
    %v1073 = vand.u32 2147483647, %v1048
    %vm1074 = vcmp.eq.f32.partialorder %v1073, 8.507059e+37
    %v1075 = vand.u32 %v1048, 2147483648
    %v1076 = vor.u32 1.1754944e-38, %v1075
    %v1077 = vsel %vm1074, %v1076, %v1072
    %v1078 = vmul.f32 1.0, %v1077
    %v1079 = vadd.f32 %v1037, %v296
    %v1080 = vmul.f32 %v1063, %v1079
    %v1081 = vadd.f32 %v978, %v1080
    %v1082 = vtanh.pop %v1081
    %v1083 = vsub.f32 %v972, %v1082
    %v1084 = vmul.f32 %v1078, %v1083
    %v1085 = vadd.f32 %v1082, %v1084
    %s1086 = scalar_lea.vmem [#allocation3], 48
    %1087 = vst [vmem:[%s1086] sm:$0xff] %v1085
    %s1088 = scalar_lea.vmem [#allocation2], 168
    %v1089 = vld [vmem:[%s1088] sm:$0xff]
    %v1090 = vld [vmem:[%s1088 + $0x8] sm:$0xff]
    %v1091 = vld [vmem:[%s1088 + $0x10] sm:$0xff]
    %1092 = vmatpush.msra.mxu0 %v291
    %1093 = vmatpush.msra.mxu0 %v288
    %1094 = vmatpush.msra.mxu0 %v285
    %1095 = vmatpush.msra.mxu0 %v282
    %1096 = vmatpush.msra.mxu0 %v279
    %1097 = vmatpush.msra.mxu0 %v276
    %1098 = vmatpush.msra.mxu0 %v273
    %1099 = vmatpush.msra.mxu0 %v270
    %1100 = vmatpush.msra.mxu0 %v267
    %1101 = vmatpush.msra.mxu0 %v264
    %1102 = vmatpush.msra.mxu0 %v261
    %1103 = vmatpush.msra.mxu0 %v258
    %1104 = vmatpush.msra.mxu0 %v255
    %1105 = vmatpush.msra.mxu0 %v252
    %1106 = vmatpush.msra.mxu0 %v249
    %1107 = vmatpush.msra.mxu0 %v246
    %1108 = vmatmul.f32.gmra.mxu0 %v1085
    %v1109 = vpop.f32.mrf.mxu0
    %v1110 = vadd.f32 0.0, %v1109
    %1111 = vdwg.mxu0
    %1112 = vmatpush.msra.mxu0 %v292
    %1113 = vmatpush.msra.mxu0 %v289
    %1114 = vmatpush.msra.mxu0 %v286
    %1115 = vmatpush.msra.mxu0 %v283
    %1116 = vmatpush.msra.mxu0 %v280
    %1117 = vmatpush.msra.mxu0 %v277
    %1118 = vmatpush.msra.mxu0 %v274
    %1119 = vmatpush.msra.mxu0 %v271
    %1120 = vmatpush.msra.mxu0 %v268
    %1121 = vmatpush.msra.mxu0 %v265
    %1122 = vmatpush.msra.mxu0 %v262
    %1123 = vmatpush.msra.mxu0 %v259
    %1124 = vmatpush.msra.mxu0 %v256
    %1125 = vmatpush.msra.mxu0 %v253
    %1126 = vmatpush.msra.mxu0 %v250
    %1127 = vmatpush.msra.mxu0 %v247
    %1128 = vmatmul.f32.gmra.mxu0 %v1085
    %v1129 = vpop.f32.mrf.mxu0
    %v1130 = vadd.f32 0.0, %v1129
    %1131 = vdwg.mxu0
    %1132 = vmatpush.msra.mxu0 %v293
    %1133 = vmatpush.msra.mxu0 %v290
    %1134 = vmatpush.msra.mxu0 %v287
    %1135 = vmatpush.msra.mxu0 %v284
    %1136 = vmatpush.msra.mxu0 %v281
    %1137 = vmatpush.msra.mxu0 %v278
    %1138 = vmatpush.msra.mxu0 %v275
    %1139 = vmatpush.msra.mxu0 %v272
    %1140 = vmatpush.msra.mxu0 %v269
    %1141 = vmatpush.msra.mxu0 %v266
    %1142 = vmatpush.msra.mxu0 %v263
    %1143 = vmatpush.msra.mxu0 %v260
    %1144 = vmatpush.msra.mxu0 %v257
    %1145 = vmatpush.msra.mxu0 %v254
    %1146 = vmatpush.msra.mxu0 %v251
    %1147 = vmatpush.msra.mxu0 %v248
    %1148 = vmatmul.f32.gmra.mxu0 %v1085
    %v1149 = vpop.f32.mrf.mxu0
    %v1150 = vadd.f32 0.0, %v1149
    %1151 = vdwg.mxu0
    %v1152 = vadd.f32 %v1089, %v1110
    %v1153 = vadd.f32 %v1090, %v1130
    %v1154 = vxor.u32 %v1152, 2147483648
    %v1155 = vxor.u32 %v1153, 2147483648
    %v1156 = vmul.f32 %v1154, 1.442695
    %v1157 = vpow.pop %v1156
    %v1158 = vmul.f32 %v1155, 1.442695
    %v1159 = vpow.pop %v1158
    %v1160 = vadd.f32 %v1157, 1.0
    %v1161 = vadd.f32 %v1159, 1.0
    %v1162 = vrcp.pop %v1160
    %v1163 = vmul.f32 %v1160, %v1162
    %v1164 = vsub.f32 1.0, %v1163
    %v1165 = vmul.f32 %v1162, %v1164
    %v1166 = vadd.f32 %v1162, %v1165
    %vm1167 = vweird.f32 %v1160
    %vm1168 = vweird.f32 %v1162
    %vm1169 = vmor %vm1167, %vm1168
    %v1170 = vsel %vm1169, %v1162, %v1166
    %v1171 = vand.u32 2147483647, %v1160
    %vm1172 = vcmp.eq.f32.partialorder %v1171, 8.507059e+37
    %v1173 = vand.u32 %v1160, 2147483648
    %v1174 = vor.u32 1.1754944e-38, %v1173
    %v1175 = vsel %vm1172, %v1174, %v1170
    %v1176 = vmul.f32 1.0, %v1175
    %v1177 = vrcp.pop %v1161
    %v1178 = vmul.f32 %v1161, %v1177
    %v1179 = vsub.f32 1.0, %v1178
    %v1180 = vmul.f32 %v1177, %v1179
    %v1181 = vadd.f32 %v1177, %v1180
    %vm1182 = vweird.f32 %v1161
    %vm1183 = vweird.f32 %v1177
    %vm1184 = vmor %vm1182, %vm1183
    %v1185 = vsel %vm1184, %v1177, %v1181
    %v1186 = vand.u32 2147483647, %v1161
    %vm1187 = vcmp.eq.f32.partialorder %v1186, 8.507059e+37
    %v1188 = vand.u32 %v1161, 2147483648
    %v1189 = vor.u32 1.1754944e-38, %v1188
    %v1190 = vsel %vm1187, %v1189, %v1185
    %v1191 = vmul.f32 1.0, %v1190
    %v1192 = vadd.f32 %v1150, %v296
    %v1193 = vmul.f32 %v1176, %v1192
    %v1194 = vadd.f32 %v1091, %v1193
    %v1195 = vtanh.pop %v1194
    %v1196 = vsub.f32 %v1085, %v1195
    %v1197 = vmul.f32 %v1191, %v1196
    %v1198 = vadd.f32 %v1195, %v1197
    %s1199 = scalar_lea.vmem [#allocation3], 56
    %1200 = vst [vmem:[%s1199] sm:$0xff] %v1198
    %1201 = vst [vmem:[#allocation8] sm:$0xff] %v1198
    %v1202 = vld [vmem:[#allocation3] sm:$0xff]
    %v1203 = vld [vmem:[#allocation3 + $0x8] sm:$0xff]
    %v1204 = vld [vmem:[#allocation3 + $0x10] sm:$0xff]
    %v1205 = vld [vmem:[#allocation3 + $0x18] sm:$0xff]
    %v1206 = vld [vmem:[#allocation3 + $0x20] sm:$0xff]
    %v1207 = vld [vmem:[#allocation3 + $0x28] sm:$0xff]
    %v1208 = vld [vmem:[#allocation3 + $0x30] sm:$0xff]
    %v1209 = vld [vmem:[#allocation3 + $0x38] sm:$0xff]
    %v1210 = vld [vmem:[%s6] sm:$0xff]
    %v1211 = vld [vmem:[%s6 + $0x8] sm:$0xff]
    %v1212 = vld [vmem:[%s6 + $0x10] sm:$0xff]
    %v1213 = vld [vmem:[%s6 + $0x18] sm:$0xff]
    %v1214 = vld [vmem:[%s6 + $0x20] sm:$0xff]
    %v1215 = vld [vmem:[%s6 + $0x28] sm:$0xff]
    %v1216 = vld [vmem:[%s6 + $0x30] sm:$0xff]
    %v1217 = vld [vmem:[%s6 + $0x38] sm:$0xff]
    %v1218 = vld [vmem:[%s6 + $0x40] sm:$0xff]
    %v1219 = vld [vmem:[%s6 + $0x48] sm:$0xff]
    %v1220 = vld [vmem:[%s6 + $0x50] sm:$0xff]
    %v1221 = vld [vmem:[%s6 + $0x58] sm:$0xff]
    %v1222 = vld [vmem:[%s6 + $0x60] sm:$0xff]
    %v1223 = vld [vmem:[%s6 + $0x68] sm:$0xff]
    %v1224 = vld [vmem:[%s6 + $0x70] sm:$0xff]
    %v1225 = vld [vmem:[%s6 + $0x78] sm:$0xff]
    %v1226 = vld [vmem:[%s7] sm:$0x1]
    %v1228 = vperm.slane %v1226, 0
    %1230 = vmatpush.msra.mxu0 %v1225
    %1231 = vmatpush.msra.mxu0 %v1224
    %1232 = vmatpush.msra.mxu0 %v1223
    %1233 = vmatpush.msra.mxu0 %v1222
    %1234 = vmatpush.msra.mxu0 %v1221
    %1235 = vmatpush.msra.mxu0 %v1220
    %1236 = vmatpush.msra.mxu0 %v1219
    %1237 = vmatpush.msra.mxu0 %v1218
    %1238 = vmatpush.msra.mxu0 %v1217
    %1239 = vmatpush.msra.mxu0 %v1216
    %1240 = vmatpush.msra.mxu0 %v1215
    %1241 = vmatpush.msra.mxu0 %v1214
    %1242 = vmatpush.msra.mxu0 %v1213
    %1243 = vmatpush.msra.mxu0 %v1212
    %1244 = vmatpush.msra.mxu0 %v1211
    %1245 = vmatpush.msra.mxu0 %v1210
    %1246 = vmatmul.f32.gmra.mxu0 %v1202
    %v1247 = vpop.f32.mrf.mxu0
    %v1248 = vadd.f32 %v1228, %v1247
    %1249 = vmatmul.f32.gmra.mxu0 %v1203
    %v1250 = vpop.f32.mrf.mxu0
    %v1251 = vadd.f32 %v1228, %v1250
    %1252 = vmatmul.f32.gmra.mxu0 %v1204
    %v1253 = vpop.f32.mrf.mxu0
    %v1254 = vadd.f32 %v1228, %v1253
    %1255 = vmatmul.f32.gmra.mxu0 %v1205
    %v1256 = vpop.f32.mrf.mxu0
    %v1257 = vadd.f32 %v1228, %v1256
    %1258 = vmatmul.f32.gmra.mxu0 %v1206
    %v1259 = vpop.f32.mrf.mxu0
    %v1260 = vadd.f32 %v1228, %v1259
    %1261 = vmatmul.f32.gmra.mxu0 %v1207
    %v1262 = vpop.f32.mrf.mxu0
    %v1263 = vadd.f32 %v1228, %v1262
    %1264 = vmatmul.f32.gmra.mxu0 %v1208
    %v1265 = vpop.f32.mrf.mxu0
    %v1266 = vadd.f32 %v1228, %v1265
    %1267 = vmatmul.f32.gmra.mxu0 %v1209
    %v1268 = vpop.f32.mrf.mxu0
    %v1269 = vadd.f32 %v1228, %v1268
    %1270 = vdwg.mxu0
    %v1271 = vmax.f32 %v1248, 0.0
    %v1272 = vmax.f32 %v1251, 0.0
    %v1273 = vmax.f32 %v1254, 0.0
    %v1274 = vmax.f32 %v1257, 0.0
    %v1275 = vmax.f32 %v1260, 0.0
    %v1276 = vmax.f32 %v1263, 0.0
    %v1277 = vmax.f32 %v1266, 0.0
    %v1278 = vmax.f32 %v1269, 0.0
    %v1279 = vld [vmem:[%s8] sm:$0xff]
    %v1280 = vld [vmem:[%s8 + $0x8] sm:$0xff]
    %v1281 = vld [vmem:[%s8 + $0x10] sm:$0xff]
    %v1282 = vld [vmem:[%s8 + $0x18] sm:$0xff]
    %v1283 = vld [vmem:[%s8 + $0x20] sm:$0xff]
    %v1284 = vld [vmem:[%s8 + $0x28] sm:$0xff]
    %v1285 = vld [vmem:[%s8 + $0x30] sm:$0xff]
    %v1286 = vld [vmem:[%s8 + $0x38] sm:$0xff]
    %v1287 = vld [vmem:[%s9] sm:$0x1]
    %v1289 = vperm.slane %v1287, 0
    %vm1291 = vcmask 523264
    %v1293 = vsel %vm1291, %v1271, 0
    %v1296 = vsel %vm1291, %v1272, 0
    %v1299 = vsel %vm1291, %v1273, 0
    %v1302 = vsel %vm1291, %v1274, 0
    %v1305 = vsel %vm1291, %v1275, 0
    %v1308 = vsel %vm1291, %v1276, 0
    %v1311 = vsel %vm1291, %v1277, 0
    %v1314 = vsel %vm1291, %v1278, 0
    %1316 = vmatpush.msra.mxu0 0.0
    %1317 = vmatpush.msra.mxu0 0.0
    %1318 = vmatpush.msra.mxu0 0.0
    %1319 = vmatpush.msra.mxu0 0.0
    %1320 = vmatpush.msra.mxu0 0.0
    %1321 = vmatpush.msra.mxu0 0.0
    %1322 = vmatpush.msra.mxu0 0.0
    %1323 = vmatpush.msra.mxu0 0.0
    %1324 = vmatpush.msra.mxu0 %v1286
    %1325 = vmatpush.msra.mxu0 %v1285
    %1326 = vmatpush.msra.mxu0 %v1284
    %1327 = vmatpush.msra.mxu0 %v1283
    %1328 = vmatpush.msra.mxu0 %v1282
    %1329 = vmatpush.msra.mxu0 %v1281
    %1330 = vmatpush.msra.mxu0 %v1280
    %1331 = vmatpush.msra.mxu0 %v1279
    %1332 = vmatmul.f32.gmra.mxu0 %v1293
    %v1333 = vpop.f32.mrf.mxu0
    %v1334 = vadd.f32 %v1289, %v1333
    %1335 = vmatmul.f32.gmra.mxu0 %v1296
    %v1336 = vpop.f32.mrf.mxu0
    %v1337 = vadd.f32 %v1289, %v1336
    %1338 = vmatmul.f32.gmra.mxu0 %v1299
    %v1339 = vpop.f32.mrf.mxu0
    %v1340 = vadd.f32 %v1289, %v1339
    %1341 = vmatmul.f32.gmra.mxu0 %v1302
    %v1342 = vpop.f32.mrf.mxu0
    %v1343 = vadd.f32 %v1289, %v1342
    %1344 = vmatmul.f32.gmra.mxu0 %v1305
    %v1345 = vpop.f32.mrf.mxu0
    %v1346 = vadd.f32 %v1289, %v1345
    %1347 = vmatmul.f32.gmra.mxu0 %v1308
    %v1348 = vpop.f32.mrf.mxu0
    %v1349 = vadd.f32 %v1289, %v1348
    %1350 = vmatmul.f32.gmra.mxu0 %v1311
    %v1351 = vpop.f32.mrf.mxu0
    %v1352 = vadd.f32 %v1289, %v1351
    %1353 = vmatmul.f32.gmra.mxu0 %v1314
    %v1354 = vpop.f32.mrf.mxu0
    %v1355 = vadd.f32 %v1289, %v1354
    %1356 = vdwg.mxu0
    %1357 = vst [vmem:[#allocation7] sm:$0xff] %v1334
    %1358 = vst [vmem:[#allocation7 + $0x8] sm:$0xff] %v1337
    %1359 = vst [vmem:[#allocation7 + $0x10] sm:$0xff] %v1340
    %1360 = vst [vmem:[#allocation7 + $0x18] sm:$0xff] %v1343
    %1361 = vst [vmem:[#allocation7 + $0x20] sm:$0xff] %v1346
    %1362 = vst [vmem:[#allocation7 + $0x28] sm:$0xff] %v1349
    %1363 = vst [vmem:[#allocation7 + $0x30] sm:$0xff] %v1352
    %1364 = vst [vmem:[#allocation7 + $0x38] sm:$0xff] %v1355
    // Predicated region
    $region46: #{tpu_custom_call.1} parent=1 // pred_check
      _
    $region47: #{tpu_custom_call.1} parent=1 // pred_check_branch
      %1366 = sbr.rel (0) target = $region49
    $region48: #{tpu_custom_call.1} parent=1 // pred_region
      %1368 = vsyncadd [#allocation6], 0
      %s1369 = sshll.u32 [#allocation7], 4
      %s1370 = int_to_ptr.vmem [resolvable:$true] %s1369
      %s1371 = sshll.u32 %s10, 4
      %s1372 = int_to_ptr.hbm [resolvable:$true] %s1371
      %1377 = dma.vmem_to_hbm [thread:$0]  %s1370, 1024, %s1372, [#allocation6], 128, 128, 8
    $region49: #{tpu_custom_call.1} parent=1 // pred_fallthru
      _
    // Predicated region
    $region50: #{tpu_custom_call.1} parent=1 // pred_check
      _
    $region51: #{tpu_custom_call.1} parent=1 // pred_check_branch
      %1379 = sbr.rel (0) target = $region53
    $region52: #{tpu_custom_call.1} parent=1 // pred_region
      %1381 = vsyncadd [#allocation9], 0
      %s1383 = sshll.u32 [#allocation8], 4
      %s1384 = int_to_ptr.vmem [resolvable:$true] %s1383
      %s1385 = sshll.u32 %s11, 4
      %s1386 = int_to_ptr.hbm [resolvable:$true] %s1385
      %1388 = dma.vmem_to_hbm [thread:$0]  %s1384, 128, %s1386, [#allocation9]
    $region53: #{tpu_custom_call.1} parent=1 // pred_fallthru
      _
    // Predicated region
    $region54: #{tpu_custom_call.1} parent=1 // pred_check
      _
    $region55: #{tpu_custom_call.1} parent=1 // pred_check_branch
      %1390 = sbr.rel (0) target = $region57
    $region56: #{tpu_custom_call.1} parent=1 // pred_region
      %1392 = dma.done [#allocation6], 1024
    $region57: #{tpu_custom_call.1} parent=1 // pred_fallthru
      _
    // Predicated region
    $region58: #{tpu_custom_call.1} parent=1 // pred_check
      _
    $region59: #{tpu_custom_call.1} parent=1 // pred_check_branch
      %1394 = sbr.rel (0) target = $region61
    $region60: #{tpu_custom_call.1} parent=1 // pred_region
      %1396 = dma.done [#allocation9], 128
    $region61: #{tpu_custom_call.1} parent=1 // pred_fallthru
      _
    %1397 = vsyncpa [#allocation5], 1
    %1398 = vsyncpa [#allocation6], 1
    %1399 = vsyncpa [#allocation9], 1

</llo_original>
